<compile_context>
chip_gen: v5e
topology: v5e:2x2
jax: 0.10.0
libtpu: 0.0.40
codegen_flags: <defaults>
</compile_context>

<pallas_src>
import jax
import jax.numpy as jnp
from jax.experimental import pallas as pl
from jax.experimental.pallas import tpu as pltpu

# ---------------- configuration (small, consistent with the module) ---------
USER_NUM = 32
ITEM_NUM = 48
FACTOR_NUM = 8
NUM_LAYERS = 3                                   # MLP tower depth
D_MODEL = FACTOR_NUM * 2 ** (NUM_LAYERS - 1)     # 32
D_FF = D_MODEL                                   # dim_feedforward = d_model
N_ENC_LAYERS = 3                                 # transformer encoder layers
BATCH = 8
LN_EPS = 1e-5
N_TOTAL = USER_NUM + ITEM_NUM                    # 80 rows in the fused table


# ---------------------------- Pallas kernel ---------------------------------
def ncf_att_kernel(idx_ref, emb_ref, wmat_ref, vec_ref, out_ref):
    f32 = jnp.float32
    B = idx_ref.shape[0]
    NT, D2 = emb_ref.shape            # (80, 64)
    D = D2 // 2                       # 32

    # Lane masks for the two 32-lane halves (hoisted; reused by every LN).
    lane = jax.lax.broadcasted_iota(jnp.int32, (B, D2), 1)
    mask_u = (lane < D).astype(f32)
    mask_i = 1.0 - mask_u
    inv_d = 1.0 / D

    def ln_halves(x, w, b):
        # Per-tower LayerNorm: reduce each 32-lane half separately (masked
        # lane reductions run on the XLU, which has slack here).
        su = jnp.sum(x * mask_u, axis=-1, keepdims=True)
        si = jnp.sum(x * mask_i, axis=-1, keepdims=True)
        mu = (su * mask_u + si * mask_i) * inv_d
        d = x - mu
        d2 = d * d
        vu = jnp.sum(d2 * mask_u, axis=-1, keepdims=True)
        vi = jnp.sum(d2 * mask_i, axis=-1, keepdims=True)
        var = (vu * mask_u + vi * mask_i) * inv_d
        return d * jax.lax.rsqrt(var + LN_EPS) * w + b

    def mm(x, j):
        # Matrix j (0..11) of the paired weight slab: j//2 picks the (64, 128)
        # pair, j%2 picks the 64-lane half.  Low halves use a lane-aligned
        # weight window; high halves do the full 128-wide dot and keep the
        # high half of the (one-vreg) result.
        p, half = divmod(j, 2)
        if half == 0:
            return jnp.dot(x, wmat_ref[p, :, 0:D2], preferred_element_type=f32)
        y = jnp.dot(x, wmat_ref[p], preferred_element_type=f32)   # (B, 128)
        return y[:, D2:]

    def vrow(r):
        return vec_ref[r:r + 1, :]                  # (1, 64) Ref-window load

    # ---- embedding gather: one two-hot x block-diagonal-table MXU pass -----
    gid = idx_ref[...]                                            # (B, 2) i32
    iota = jax.lax.broadcasted_iota(jnp.int32, (B, NT), 1)
    twohot = jnp.logical_or(iota == gid[:, 0:1],
                            iota == gid[:, 1:2]).astype(f32)      # (B, 80)
    x = jnp.dot(twohot, emb_ref[...], preferred_element_type=f32)  # (B, 64)

    # ---- fused (block-diagonal) user+item encoder towers -------------------
    # seq_len == 1  =>  self-attention collapses to the fused V/out projection.
    for l in range(N_ENC_LAYERS):
        r0 = 8 * l
        sa = mm(x, 3 * l + 0) + vrow(r0 + 0)
        x = ln_halves(x + sa, vrow(r0 + 1), vrow(r0 + 2))
        ff = jnp.maximum(mm(x, 3 * l + 1) + vrow(r0 + 3), 0.0)
        ff = mm(ff, 3 * l + 2) + vrow(r0 + 4)
        x = ln_halves(x + ff, vrow(r0 + 5), vrow(r0 + 6))

    # ---- MLP tower: [user | item] already adjacent in lanes == the concat --
    # Narrowing layers are zero-padded to 64 lanes (exact: zeros survive ReLU).
    h = jnp.maximum(mm(x, 9) + vrow(7), 0.0)      # 64 -> 32 (lanes >= 32 zero)
    h = jnp.maximum(mm(h, 10) + vrow(15), 0.0)    # 32 -> 16
    h = jnp.maximum(mm(h, 11) + vrow(23), 0.0)    # 16 -> 8

    # predict layer as a masked lane reduction (pw row is zero beyond lane 7)
    out_ref[...] = (jnp.sum(h * vrow(24), axis=-1, keepdims=True)
                    + vec_ref[25:26, 0:1])


# ------------------------------ wrapper --------------------------------------
@jax.jit
def ncf_att_forward(user, item, prep):
    B = user.shape[0]
    # global row ids in the fused table: user -> [0, USER_NUM), item -> offset
    gid = jnp.stack([user.astype(jnp.int32),
                     item.astype(jnp.int32) + USER_NUM], axis=-1)     # (B, 2)

    vmem = pl.BlockSpec(memory_space=pltpu.MemorySpace.VMEM)
    cost = pl.CostEstimate(flops=1_700_000, transcendentals=3_072,
                           bytes_accessed=250_000)
    out = pl.pallas_call(
        ncf_att_kernel,
        out_shape=jax.ShapeDtypeStruct((B, 1), jnp.float32),
        in_specs=[vmem, vmem, vmem, vmem],
        out_specs=vmem,
        cost_estimate=cost,
    )(gid, prep["emb"], prep["wmat"], prep["vec"])
    return out.reshape(-1)  # prediction.view(-1)


# ----------------- one-time parameter fusion / packing -----------------------
def prepare_params(p):
    """One-time exact algebra: fuse Wv@Wo, block-diagonalize the two towers,
    and pack everything into 3 lane-dense slabs (runs outside the hot path)."""
    f32 = jnp.float32
    L, D = N_ENC_LAYERS, D_MODEL
    D2 = 2 * D

    # fused attention projection (softmax over a length-1 key == 1.0)
    wvo = jnp.einsum('tlde,tlef->tldf', p["wv"], p["wo"])            # (T,L,D,D)
    bvo = jnp.einsum('tlxd,tlde->tlxe', p["bv"], p["wo"]) + p["bo"]  # (T,L,1,D)

    def bdiag(m):                    # (2, D, D) -> (2D, 2D) block-diagonal
        z = jnp.zeros((D, D), f32)
        return jnp.block([[m[0], z], [z, m[1]]])

    def pad64(m):                    # zero-pad any (r, c) to (2D, 2D)
        return jnp.zeros((D2, D2), f32).at[:m.shape[0], :m.shape[1]].set(m)

    # 12 (64, 64) matrices in issue order, packed two-per-row -> (6, 64, 128)
    mats = []
    for l in range(L):
        mats += [bdiag(wvo[:, l]), bdiag(p["w1"][:, l]), bdiag(p["w2"][:, l])]
    mats += [pad64(p["mw0"]), pad64(p["mw1"]), pad64(p["mw2"])]
    wmat = jnp.stack([jnp.concatenate([mats[2 * i], mats[2 * i + 1]], axis=1)
                      for i in range(len(mats) // 2)])               # (6,64,128)

    # vector slab (32, 64): rows 8l+0..6 = per-layer [bvo, ln1w, ln1b, b1, b2,
    # ln2w, ln2b]; rows 7/15/23 = MLP biases; row 24 = predict w; row 25 = b.
    def cat2(v):                     # (2, 1, D) -> (1, 2D)
        return jnp.concatenate([v[0], v[1]], axis=-1)

    def padrow(v):                   # 1-D -> (2D,)
        return jnp.zeros((D2,), f32).at[:v.shape[0]].set(v)

    vec = jnp.zeros((32, D2), f32)
    for l in range(L):
        rows = jnp.concatenate(
            [cat2(bvo[:, l]), cat2(p["ln1w"][:, l]), cat2(p["ln1b"][:, l]),
             cat2(p["b1"][:, l]), cat2(p["b2"][:, l]),
             cat2(p["ln2w"][:, l]), cat2(p["ln2b"][:, l])], axis=0)  # (7, 2D)
        vec = vec.at[8 * l:8 * l + 7].set(rows)
    vec = vec.at[7].set(padrow(p["mb0"][0]))
    vec = vec.at[15].set(padrow(p["mb1"][0]))
    vec = vec.at[23].set(padrow(p["mb2"][0]))
    vec = vec.at[24].set(padrow(p["pw"][:, 0]))
    vec = vec.at[25].set(padrow(p["pb"][0]))

    # block-diagonal embedding table: user rows use lanes 0..D-1, item rows
    # (offset by USER_NUM) use lanes D..2D-1 -> one gather lands user|item.
    emb = jnp.zeros((N_TOTAL, D2), f32)
    emb = emb.at[:USER_NUM, :D].set(p["emb_user"])
    emb = emb.at[USER_NUM:, D:].set(p["emb_item"])

    return dict(emb=emb, wmat=wmat, vec=vec)


# ----------------------- deterministic parameter init ------------------------
def init_params(key):
    keys = iter(jax.random.split(key, 16))

    def xavier(k, shape):
        fan_in, fan_out = shape[-2], shape[-1]
        lim = (6.0 / (fan_in + fan_out)) ** 0.5
        return jax.random.uniform(k, shape, jnp.float32, -lim, lim)

    T, L, D, F = 2, N_ENC_LAYERS, D_MODEL, D_FF
    p = {}
    p["emb_user"] = 0.01 * jax.random.normal(next(keys), (USER_NUM, D), jnp.float32)
    p["emb_item"] = 0.01 * jax.random.normal(next(keys), (ITEM_NUM, D), jnp.float32)

    # transformer towers: leading dims (tower=2, layer=3); weights stored (in, out)
    p["wv"] = xavier(next(keys), (T, L, D, D))
    p["bv"] = jnp.zeros((T, L, 1, D), jnp.float32)
    p["wo"] = xavier(next(keys), (T, L, D, D))
    p["bo"] = jnp.zeros((T, L, 1, D), jnp.float32)
    p["ln1w"] = jnp.ones((T, L, 1, D), jnp.float32)
    p["ln1b"] = jnp.zeros((T, L, 1, D), jnp.float32)
    p["w1"] = xavier(next(keys), (T, L, D, F))
    p["b1"] = jnp.zeros((T, L, 1, F), jnp.float32)
    p["w2"] = xavier(next(keys), (T, L, F, D))
    p["b2"] = jnp.zeros((T, L, 1, D), jnp.float32)
    p["ln2w"] = jnp.ones((T, L, 1, D), jnp.float32)
    p["ln2b"] = jnp.zeros((T, L, 1, D), jnp.float32)

    # MLP tower: sizes 2*D -> D -> D/2 -> D/4 (= FACTOR_NUM); biases zeroed
    p["mw0"] = xavier(next(keys), (2 * D, D))
    p["mb0"] = jnp.zeros((1, D), jnp.float32)
    p["mw1"] = xavier(next(keys), (D, D // 2))
    p["mb1"] = jnp.zeros((1, D // 2), jnp.float32)
    p["mw2"] = xavier(next(keys), (D // 2, D // 4))
    p["mb2"] = jnp.zeros((1, D // 4), jnp.float32)

    # predict layer: kaiming_uniform(a=1, sigmoid) over fan_in=FACTOR_NUM
    bound = (3.0 / FACTOR_NUM) ** 0.5
    p["pw"] = jax.random.uniform(next(keys), (FACTOR_NUM, 1), jnp.float32, -bound, bound)
    p["pb"] = jnp.zeros((1, 1), jnp.float32)
    return p


# --------------------------- pure-JAX reference ------------------------------
def reference_forward(user, item, p):
    """Faithful unfused math (separate Wv/Wo, real concat, unpadded MLP)."""
    def ln(x, w, b):
        mu = jnp.mean(x, -1, keepdims=True)
        var = jnp.mean((x - mu) ** 2, -1, keepdims=True)
        return (x - mu) * jax.lax.rsqrt(var + LN_EPS) * w + b

    def tower(x, t):
        for l in range(N_ENC_LAYERS):
            v = x @ p["wv"][t, l] + p["bv"][t, l]
            sa = v @ p["wo"][t, l] + p["bo"][t, l]
            x = ln(x + sa, p["ln1w"][t, l], p["ln1b"][t, l])
            ff = jnp.maximum(x @ p["w1"][t, l] + p["b1"][t, l], 0.0)
            ff = ff @ p["w2"][t, l] + p["b2"][t, l]
            x = ln(x + ff, p["ln2w"][t, l], p["ln2b"][t, l])
        return x

    u = tower(p["emb_user"][user], 0)
    it = tower(p["emb_item"][item], 1)
    h = jnp.concatenate([u, it], -1)
    h = jnp.maximum(h @ p["mw0"] + p["mb0"], 0.0)
    h = jnp.maximum(h @ p["mw1"] + p["mb1"], 0.0)
    h = jnp.maximum(h @ p["mw2"] + p["mb2"], 0.0)
    return (h @ p["pw"] + p["pb"]).reshape(-1)


# --------------------------------- main --------------------------------------
if __name__ == "__main__":
    key = jax.random.PRNGKey(0)
    k_param, k_user, k_item = jax.random.split(key, 3)

    raw = init_params(k_param)
    prep = prepare_params(raw)   # one-time fusion/packing, outside the hot path

    user = jax.random.randint(k_user, (BATCH,), 0, USER_NUM, dtype=jnp.int32)
    item = jax.random.randint(k_item, (BATCH,), 0, ITEM_NUM, dtype=jnp.int32)

    pred = jax.block_until_ready(ncf_att_forward(user, item, prep))
    ref = reference_forward(user, item, raw)

    assert pred.shape == (BATCH,)
    # slight slack over 1e-4: single-dot MLP layer / block-diag contraction
    # change accumulation order vs. the unfused reference
    assert jnp.allclose(pred, ref, atol=2e-4, rtol=2e-4), (pred, ref)

    print("KERNEL_OK")
</pallas_src>

<mosaic_0001>
module attributes {stable_mosaic.version = 11 : i64} {
  func.func @ncf_att_kernel(%arg0: memref<8x2xi32, #tpu.memory_space<vmem>>, %arg1: memref<80x64xf32, #tpu.memory_space<vmem>>, %arg2: memref<6x64x128xf32, #tpu.memory_space<vmem>>, %arg3: memref<32x64xf32, #tpu.memory_space<vmem>>, %arg4: memref<8x1xf32, #tpu.memory_space<vmem>>) attributes {dimension_semantics = [], scalar_prefetch = 0 : i64, scratch_operands = 0 : i64, tpu.core_type = #tpu.core_type<tc>} {
    %0 = tpu.iota {dimensions = array<i32: 1>} : vector<8x64xi32>
    %c32_i32 = arith.constant 32 : i32
    %1 = vector.broadcast %c32_i32 : i32 to vector<8x64xi32>
    %2 = arith.cmpi slt, %0, %1 : vector<8x64xi32>
    %3 = arith.extui %2 : vector<8x64xi1> to vector<8x64xi32>
    %4 = arith.sitofp %3 : vector<8x64xi32> to vector<8x64xf32>
    %cst = arith.constant 1.000000e+00 : f32
    %5 = vector.broadcast %cst : f32 to vector<8x64xf32>
    %6 = arith.subf %5, %4 : vector<8x64xf32>
    %c0 = arith.constant 0 : index
    %c0_0 = arith.constant 0 : index
    %7 = vector.load %arg0[%c0, %c0_0] : memref<8x2xi32, #tpu.memory_space<vmem>>, vector<8x2xi32>
    %8 = tpu.iota {dimensions = array<i32: 1>} : vector<8x80xi32>
    %9 = vector.extract_strided_slice %7 {offsets = [0, 0], sizes = [8, 1], strides = [1, 1]} : vector<8x2xi32> to vector<8x1xi32>
    %10 = vector.broadcast %9 : vector<8x1xi32> to vector<8x80xi32>
    %11 = arith.cmpi eq, %8, %10 : vector<8x80xi32>
    %12 = vector.extract_strided_slice %7 {offsets = [0, 1], sizes = [8, 1], strides = [1, 1]} : vector<8x2xi32> to vector<8x1xi32>
    %13 = vector.broadcast %12 : vector<8x1xi32> to vector<8x80xi32>
    %14 = arith.cmpi eq, %8, %13 : vector<8x80xi32>
    %15 = arith.ori %11, %14 : vector<8x80xi1>
    %16 = arith.extui %15 : vector<8x80xi1> to vector<8x80xi32>
    %17 = arith.sitofp %16 : vector<8x80xi32> to vector<8x80xf32>
    %c0_1 = arith.constant 0 : index
    %c0_2 = arith.constant 0 : index
    %18 = vector.load %arg1[%c0_1, %c0_2] : memref<80x64xf32, #tpu.memory_space<vmem>>, vector<80x64xf32>
    %cst_3 = arith.constant dense<0.000000e+00> : vector<8x64xf32>
    %19 = tpu.matmul %17, %18, %cst_3 {dimension_numbers = #tpu.dot_dimension_numbers<[1], [0], [0], [1], [0, 0, 1, 1], [], []>} : vector<8x80xf32>, vector<80x64xf32>, vector<8x64xf32> -> vector<8x64xf32>
    %c0_4 = arith.constant 0 : index
    %c0_5 = arith.constant 0 : index
    %c0_6 = arith.constant 0 : index
    %20 = vector.load %arg2[%c0_4, %c0_5, %c0_6] : memref<6x64x128xf32, #tpu.memory_space<vmem>>, vector<1x64x64xf32>
    %21 = vector.shape_cast %20 : vector<1x64x64xf32> to vector<64x64xf32>
    %cst_7 = arith.constant dense<0.000000e+00> : vector<8x64xf32>
    %22 = tpu.matmul %19, %21, %cst_7 {dimension_numbers = #tpu.dot_dimension_numbers<[1], [0], [0], [1], [0, 0, 1, 1], [], []>} : vector<8x64xf32>, vector<64x64xf32>, vector<8x64xf32> -> vector<8x64xf32>
    %c0_8 = arith.constant 0 : index
    %c0_9 = arith.constant 0 : index
    %23 = vector.load %arg3[%c0_8, %c0_9] : memref<32x64xf32, #tpu.memory_space<vmem>>, vector<1x64xf32>
    %24 = vector.broadcast %23 : vector<1x64xf32> to vector<8x64xf32>
    %25 = arith.addf %22, %24 : vector<8x64xf32>
    %26 = arith.addf %19, %25 : vector<8x64xf32>
    %c1 = arith.constant 1 : index
    %c0_10 = arith.constant 0 : index
    %27 = vector.load %arg3[%c1, %c0_10] : memref<32x64xf32, #tpu.memory_space<vmem>>, vector<1x64xf32>
    %c2 = arith.constant 2 : index
    %c0_11 = arith.constant 0 : index
    %28 = vector.load %arg3[%c2, %c0_11] : memref<32x64xf32, #tpu.memory_space<vmem>>, vector<1x64xf32>
    %29 = arith.mulf %26, %4 : vector<8x64xf32>
    %cst_12 = arith.constant dense<0.000000e+00> : vector<8xf32>
    %30 = vector.multi_reduction <add>, %29, %cst_12 [1] : vector<8x64xf32> to vector<8xf32>
    %31 = vector.shape_cast %30 : vector<8xf32> to vector<8x1xf32>
    %32 = arith.mulf %26, %6 : vector<8x64xf32>
    %cst_13 = arith.constant dense<0.000000e+00> : vector<8xf32>
    %33 = vector.multi_reduction <add>, %32, %cst_13 [1] : vector<8x64xf32> to vector<8xf32>
    %34 = vector.shape_cast %33 : vector<8xf32> to vector<8x1xf32>
    %35 = vector.broadcast %31 : vector<8x1xf32> to vector<8x64xf32>
    %36 = arith.mulf %35, %4 : vector<8x64xf32>
    %37 = vector.broadcast %34 : vector<8x1xf32> to vector<8x64xf32>
    %38 = arith.mulf %37, %6 : vector<8x64xf32>
    %39 = arith.addf %36, %38 : vector<8x64xf32>
    %cst_14 = arith.constant 3.125000e-02 : f32
    %40 = vector.broadcast %cst_14 : f32 to vector<8x64xf32>
    %41 = arith.mulf %39, %40 : vector<8x64xf32>
    %42 = arith.subf %26, %41 : vector<8x64xf32>
    %43 = arith.mulf %42, %42 : vector<8x64xf32>
    %44 = arith.mulf %43, %4 : vector<8x64xf32>
    %cst_15 = arith.constant dense<0.000000e+00> : vector<8xf32>
    %45 = vector.multi_reduction <add>, %44, %cst_15 [1] : vector<8x64xf32> to vector<8xf32>
    %46 = vector.shape_cast %45 : vector<8xf32> to vector<8x1xf32>
    %47 = arith.mulf %43, %6 : vector<8x64xf32>
    %cst_16 = arith.constant dense<0.000000e+00> : vector<8xf32>
    %48 = vector.multi_reduction <add>, %47, %cst_16 [1] : vector<8x64xf32> to vector<8xf32>
    %49 = vector.shape_cast %48 : vector<8xf32> to vector<8x1xf32>
    %50 = vector.broadcast %46 : vector<8x1xf32> to vector<8x64xf32>
    %51 = arith.mulf %50, %4 : vector<8x64xf32>
    %52 = vector.broadcast %49 : vector<8x1xf32> to vector<8x64xf32>
    %53 = arith.mulf %52, %6 : vector<8x64xf32>
    %54 = arith.addf %51, %53 : vector<8x64xf32>
    %cst_17 = arith.constant 3.125000e-02 : f32
    %55 = vector.broadcast %cst_17 : f32 to vector<8x64xf32>
    %56 = arith.mulf %54, %55 : vector<8x64xf32>
    %cst_18 = arith.constant 9.99999974E-6 : f32
    %57 = vector.broadcast %cst_18 : f32 to vector<8x64xf32>
    %58 = arith.addf %56, %57 : vector<8x64xf32>
    %59 = math.rsqrt %58 : vector<8x64xf32>
    %60 = arith.mulf %42, %59 : vector<8x64xf32>
    %61 = vector.broadcast %27 : vector<1x64xf32> to vector<8x64xf32>
    %62 = arith.mulf %60, %61 : vector<8x64xf32>
    %63 = vector.broadcast %28 : vector<1x64xf32> to vector<8x64xf32>
    %64 = arith.addf %62, %63 : vector<8x64xf32>
    %c0_19 = arith.constant 0 : index
    %c0_20 = arith.constant 0 : index
    %c0_21 = arith.constant 0 : index
    %65 = vector.load %arg2[%c0_19, %c0_20, %c0_21] : memref<6x64x128xf32, #tpu.memory_space<vmem>>, vector<1x64x128xf32>
    %66 = vector.shape_cast %65 : vector<1x64x128xf32> to vector<64x128xf32>
    %cst_22 = arith.constant dense<0.000000e+00> : vector<8x128xf32>
    %67 = tpu.matmul %64, %66, %cst_22 {dimension_numbers = #tpu.dot_dimension_numbers<[1], [0], [0], [1], [0, 0, 1, 1], [], []>} : vector<8x64xf32>, vector<64x128xf32>, vector<8x128xf32> -> vector<8x128xf32>
    %68 = vector.extract_strided_slice %67 {offsets = [0, 64], sizes = [8, 64], strides = [1, 1]} : vector<8x128xf32> to vector<8x64xf32>
    %c3 = arith.constant 3 : index
    %c0_23 = arith.constant 0 : index
    %69 = vector.load %arg3[%c3, %c0_23] : memref<32x64xf32, #tpu.memory_space<vmem>>, vector<1x64xf32>
    %70 = vector.broadcast %69 : vector<1x64xf32> to vector<8x64xf32>
    %71 = arith.addf %68, %70 : vector<8x64xf32>
    %cst_24 = arith.constant 0.000000e+00 : f32
    %72 = vector.broadcast %cst_24 : f32 to vector<8x64xf32>
    %73 = arith.maximumf %71, %72 : vector<8x64xf32>
    %c1_25 = arith.constant 1 : index
    %c0_26 = arith.constant 0 : index
    %c0_27 = arith.constant 0 : index
    %74 = vector.load %arg2[%c1_25, %c0_26, %c0_27] : memref<6x64x128xf32, #tpu.memory_space<vmem>>, vector<1x64x64xf32>
    %75 = vector.shape_cast %74 : vector<1x64x64xf32> to vector<64x64xf32>
    %cst_28 = arith.constant dense<0.000000e+00> : vector<8x64xf32>
    %76 = tpu.matmul %73, %75, %cst_28 {dimension_numbers = #tpu.dot_dimension_numbers<[1], [0], [0], [1], [0, 0, 1, 1], [], []>} : vector<8x64xf32>, vector<64x64xf32>, vector<8x64xf32> -> vector<8x64xf32>
    %c4 = arith.constant 4 : index
    %c0_29 = arith.constant 0 : index
    %77 = vector.load %arg3[%c4, %c0_29] : memref<32x64xf32, #tpu.memory_space<vmem>>, vector<1x64xf32>
    %78 = vector.broadcast %77 : vector<1x64xf32> to vector<8x64xf32>
    %79 = arith.addf %76, %78 : vector<8x64xf32>
    %80 = arith.addf %64, %79 : vector<8x64xf32>
    %c5 = arith.constant 5 : index
    %c0_30 = arith.constant 0 : index
    %81 = vector.load %arg3[%c5, %c0_30] : memref<32x64xf32, #tpu.memory_space<vmem>>, vector<1x64xf32>
    %c6 = arith.constant 6 : index
    %c0_31 = arith.constant 0 : index
    %82 = vector.load %arg3[%c6, %c0_31] : memref<32x64xf32, #tpu.memory_space<vmem>>, vector<1x64xf32>
    %83 = arith.mulf %80, %4 : vector<8x64xf32>
    %cst_32 = arith.constant dense<0.000000e+00> : vector<8xf32>
    %84 = vector.multi_reduction <add>, %83, %cst_32 [1] : vector<8x64xf32> to vector<8xf32>
    %85 = vector.shape_cast %84 : vector<8xf32> to vector<8x1xf32>
    %86 = arith.mulf %80, %6 : vector<8x64xf32>
    %cst_33 = arith.constant dense<0.000000e+00> : vector<8xf32>
    %87 = vector.multi_reduction <add>, %86, %cst_33 [1] : vector<8x64xf32> to vector<8xf32>
    %88 = vector.shape_cast %87 : vector<8xf32> to vector<8x1xf32>
    %89 = vector.broadcast %85 : vector<8x1xf32> to vector<8x64xf32>
    %90 = arith.mulf %89, %4 : vector<8x64xf32>
    %91 = vector.broadcast %88 : vector<8x1xf32> to vector<8x64xf32>
    %92 = arith.mulf %91, %6 : vector<8x64xf32>
    %93 = arith.addf %90, %92 : vector<8x64xf32>
    %cst_34 = arith.constant 3.125000e-02 : f32
    %94 = vector.broadcast %cst_34 : f32 to vector<8x64xf32>
    %95 = arith.mulf %93, %94 : vector<8x64xf32>
    %96 = arith.subf %80, %95 : vector<8x64xf32>
    %97 = arith.mulf %96, %96 : vector<8x64xf32>
    %98 = arith.mulf %97, %4 : vector<8x64xf32>
    %cst_35 = arith.constant dense<0.000000e+00> : vector<8xf32>
    %99 = vector.multi_reduction <add>, %98, %cst_35 [1] : vector<8x64xf32> to vector<8xf32>
    %100 = vector.shape_cast %99 : vector<8xf32> to vector<8x1xf32>
    %101 = arith.mulf %97, %6 : vector<8x64xf32>
    %cst_36 = arith.constant dense<0.000000e+00> : vector<8xf32>
    %102 = vector.multi_reduction <add>, %101, %cst_36 [1] : vector<8x64xf32> to vector<8xf32>
    %103 = vector.shape_cast %102 : vector<8xf32> to vector<8x1xf32>
    %104 = vector.broadcast %100 : vector<8x1xf32> to vector<8x64xf32>
    %105 = arith.mulf %104, %4 : vector<8x64xf32>
    %106 = vector.broadcast %103 : vector<8x1xf32> to vector<8x64xf32>
    %107 = arith.mulf %106, %6 : vector<8x64xf32>
    %108 = arith.addf %105, %107 : vector<8x64xf32>
    %cst_37 = arith.constant 3.125000e-02 : f32
    %109 = vector.broadcast %cst_37 : f32 to vector<8x64xf32>
    %110 = arith.mulf %108, %109 : vector<8x64xf32>
    %cst_38 = arith.constant 9.99999974E-6 : f32
    %111 = vector.broadcast %cst_38 : f32 to vector<8x64xf32>
    %112 = arith.addf %110, %111 : vector<8x64xf32>
    %113 = math.rsqrt %112 : vector<8x64xf32>
    %114 = arith.mulf %96, %113 : vector<8x64xf32>
    %115 = vector.broadcast %81 : vector<1x64xf32> to vector<8x64xf32>
    %116 = arith.mulf %114, %115 : vector<8x64xf32>
    %117 = vector.broadcast %82 : vector<1x64xf32> to vector<8x64xf32>
    %118 = arith.addf %116, %117 : vector<8x64xf32>
    %c1_39 = arith.constant 1 : index
    %c0_40 = arith.constant 0 : index
    %c0_41 = arith.constant 0 : index
    %119 = vector.load %arg2[%c1_39, %c0_40, %c0_41] : memref<6x64x128xf32, #tpu.memory_space<vmem>>, vector<1x64x128xf32>
    %120 = vector.shape_cast %119 : vector<1x64x128xf32> to vector<64x128xf32>
    %cst_42 = arith.constant dense<0.000000e+00> : vector<8x128xf32>
    %121 = tpu.matmul %118, %120, %cst_42 {dimension_numbers = #tpu.dot_dimension_numbers<[1], [0], [0], [1], [0, 0, 1, 1], [], []>} : vector<8x64xf32>, vector<64x128xf32>, vector<8x128xf32> -> vector<8x128xf32>
    %122 = vector.extract_strided_slice %121 {offsets = [0, 64], sizes = [8, 64], strides = [1, 1]} : vector<8x128xf32> to vector<8x64xf32>
    %c8 = arith.constant 8 : index
    %c0_43 = arith.constant 0 : index
    %123 = vector.load %arg3[%c8, %c0_43] : memref<32x64xf32, #tpu.memory_space<vmem>>, vector<1x64xf32>
    %124 = vector.broadcast %123 : vector<1x64xf32> to vector<8x64xf32>
    %125 = arith.addf %122, %124 : vector<8x64xf32>
    %126 = arith.addf %118, %125 : vector<8x64xf32>
    %c9 = arith.constant 9 : index
    %c0_44 = arith.constant 0 : index
    %127 = vector.load %arg3[%c9, %c0_44] : memref<32x64xf32, #tpu.memory_space<vmem>>, vector<1x64xf32>
    %c10 = arith.constant 10 : index
    %c0_45 = arith.constant 0 : index
    %128 = vector.load %arg3[%c10, %c0_45] : memref<32x64xf32, #tpu.memory_space<vmem>>, vector<1x64xf32>
    %129 = arith.mulf %126, %4 : vector<8x64xf32>
    %cst_46 = arith.constant dense<0.000000e+00> : vector<8xf32>
    %130 = vector.multi_reduction <add>, %129, %cst_46 [1] : vector<8x64xf32> to vector<8xf32>
    %131 = vector.shape_cast %130 : vector<8xf32> to vector<8x1xf32>
    %132 = arith.mulf %126, %6 : vector<8x64xf32>
    %cst_47 = arith.constant dense<0.000000e+00> : vector<8xf32>
    %133 = vector.multi_reduction <add>, %132, %cst_47 [1] : vector<8x64xf32> to vector<8xf32>
    %134 = vector.shape_cast %133 : vector<8xf32> to vector<8x1xf32>
    %135 = vector.broadcast %131 : vector<8x1xf32> to vector<8x64xf32>
    %136 = arith.mulf %135, %4 : vector<8x64xf32>
    %137 = vector.broadcast %134 : vector<8x1xf32> to vector<8x64xf32>
    %138 = arith.mulf %137, %6 : vector<8x64xf32>
    %139 = arith.addf %136, %138 : vector<8x64xf32>
    %cst_48 = arith.constant 3.125000e-02 : f32
    %140 = vector.broadcast %cst_48 : f32 to vector<8x64xf32>
    %141 = arith.mulf %139, %140 : vector<8x64xf32>
    %142 = arith.subf %126, %141 : vector<8x64xf32>
    %143 = arith.mulf %142, %142 : vector<8x64xf32>
    %144 = arith.mulf %143, %4 : vector<8x64xf32>
    %cst_49 = arith.constant dense<0.000000e+00> : vector<8xf32>
    %145 = vector.multi_reduction <add>, %144, %cst_49 [1] : vector<8x64xf32> to vector<8xf32>
    %146 = vector.shape_cast %145 : vector<8xf32> to vector<8x1xf32>
    %147 = arith.mulf %143, %6 : vector<8x64xf32>
    %cst_50 = arith.constant dense<0.000000e+00> : vector<8xf32>
    %148 = vector.multi_reduction <add>, %147, %cst_50 [1] : vector<8x64xf32> to vector<8xf32>
    %149 = vector.shape_cast %148 : vector<8xf32> to vector<8x1xf32>
    %150 = vector.broadcast %146 : vector<8x1xf32> to vector<8x64xf32>
    %151 = arith.mulf %150, %4 : vector<8x64xf32>
    %152 = vector.broadcast %149 : vector<8x1xf32> to vector<8x64xf32>
    %153 = arith.mulf %152, %6 : vector<8x64xf32>
    %154 = arith.addf %151, %153 : vector<8x64xf32>
    %cst_51 = arith.constant 3.125000e-02 : f32
    %155 = vector.broadcast %cst_51 : f32 to vector<8x64xf32>
    %156 = arith.mulf %154, %155 : vector<8x64xf32>
    %cst_52 = arith.constant 9.99999974E-6 : f32
    %157 = vector.broadcast %cst_52 : f32 to vector<8x64xf32>
    %158 = arith.addf %156, %157 : vector<8x64xf32>
    %159 = math.rsqrt %158 : vector<8x64xf32>
    %160 = arith.mulf %142, %159 : vector<8x64xf32>
    %161 = vector.broadcast %127 : vector<1x64xf32> to vector<8x64xf32>
    %162 = arith.mulf %160, %161 : vector<8x64xf32>
    %163 = vector.broadcast %128 : vector<1x64xf32> to vector<8x64xf32>
    %164 = arith.addf %162, %163 : vector<8x64xf32>
    %c2_53 = arith.constant 2 : index
    %c0_54 = arith.constant 0 : index
    %c0_55 = arith.constant 0 : index
    %165 = vector.load %arg2[%c2_53, %c0_54, %c0_55] : memref<6x64x128xf32, #tpu.memory_space<vmem>>, vector<1x64x64xf32>
    %166 = vector.shape_cast %165 : vector<1x64x64xf32> to vector<64x64xf32>
    %cst_56 = arith.constant dense<0.000000e+00> : vector<8x64xf32>
    %167 = tpu.matmul %164, %166, %cst_56 {dimension_numbers = #tpu.dot_dimension_numbers<[1], [0], [0], [1], [0, 0, 1, 1], [], []>} : vector<8x64xf32>, vector<64x64xf32>, vector<8x64xf32> -> vector<8x64xf32>
    %c11 = arith.constant 11 : index
    %c0_57 = arith.constant 0 : index
    %168 = vector.load %arg3[%c11, %c0_57] : memref<32x64xf32, #tpu.memory_space<vmem>>, vector<1x64xf32>
    %169 = vector.broadcast %168 : vector<1x64xf32> to vector<8x64xf32>
    %170 = arith.addf %167, %169 : vector<8x64xf32>
    %cst_58 = arith.constant 0.000000e+00 : f32
    %171 = vector.broadcast %cst_58 : f32 to vector<8x64xf32>
    %172 = arith.maximumf %170, %171 : vector<8x64xf32>
    %c2_59 = arith.constant 2 : index
    %c0_60 = arith.constant 0 : index
    %c0_61 = arith.constant 0 : index
    %173 = vector.load %arg2[%c2_59, %c0_60, %c0_61] : memref<6x64x128xf32, #tpu.memory_space<vmem>>, vector<1x64x128xf32>
    %174 = vector.shape_cast %173 : vector<1x64x128xf32> to vector<64x128xf32>
    %cst_62 = arith.constant dense<0.000000e+00> : vector<8x128xf32>
    %175 = tpu.matmul %172, %174, %cst_62 {dimension_numbers = #tpu.dot_dimension_numbers<[1], [0], [0], [1], [0, 0, 1, 1], [], []>} : vector<8x64xf32>, vector<64x128xf32>, vector<8x128xf32> -> vector<8x128xf32>
    %176 = vector.extract_strided_slice %175 {offsets = [0, 64], sizes = [8, 64], strides = [1, 1]} : vector<8x128xf32> to vector<8x64xf32>
    %c12 = arith.constant 12 : index
    %c0_63 = arith.constant 0 : index
    %177 = vector.load %arg3[%c12, %c0_63] : memref<32x64xf32, #tpu.memory_space<vmem>>, vector<1x64xf32>
    %178 = vector.broadcast %177 : vector<1x64xf32> to vector<8x64xf32>
    %179 = arith.addf %176, %178 : vector<8x64xf32>
    %180 = arith.addf %164, %179 : vector<8x64xf32>
    %c13 = arith.constant 13 : index
    %c0_64 = arith.constant 0 : index
    %181 = vector.load %arg3[%c13, %c0_64] : memref<32x64xf32, #tpu.memory_space<vmem>>, vector<1x64xf32>
    %c14 = arith.constant 14 : index
    %c0_65 = arith.constant 0 : index
    %182 = vector.load %arg3[%c14, %c0_65] : memref<32x64xf32, #tpu.memory_space<vmem>>, vector<1x64xf32>
    %183 = arith.mulf %180, %4 : vector<8x64xf32>
    %cst_66 = arith.constant dense<0.000000e+00> : vector<8xf32>
    %184 = vector.multi_reduction <add>, %183, %cst_66 [1] : vector<8x64xf32> to vector<8xf32>
    %185 = vector.shape_cast %184 : vector<8xf32> to vector<8x1xf32>
    %186 = arith.mulf %180, %6 : vector<8x64xf32>
    %cst_67 = arith.constant dense<0.000000e+00> : vector<8xf32>
    %187 = vector.multi_reduction <add>, %186, %cst_67 [1] : vector<8x64xf32> to vector<8xf32>
    %188 = vector.shape_cast %187 : vector<8xf32> to vector<8x1xf32>
    %189 = vector.broadcast %185 : vector<8x1xf32> to vector<8x64xf32>
    %190 = arith.mulf %189, %4 : vector<8x64xf32>
    %191 = vector.broadcast %188 : vector<8x1xf32> to vector<8x64xf32>
    %192 = arith.mulf %191, %6 : vector<8x64xf32>
    %193 = arith.addf %190, %192 : vector<8x64xf32>
    %cst_68 = arith.constant 3.125000e-02 : f32
    %194 = vector.broadcast %cst_68 : f32 to vector<8x64xf32>
    %195 = arith.mulf %193, %194 : vector<8x64xf32>
    %196 = arith.subf %180, %195 : vector<8x64xf32>
    %197 = arith.mulf %196, %196 : vector<8x64xf32>
    %198 = arith.mulf %197, %4 : vector<8x64xf32>
    %cst_69 = arith.constant dense<0.000000e+00> : vector<8xf32>
    %199 = vector.multi_reduction <add>, %198, %cst_69 [1] : vector<8x64xf32> to vector<8xf32>
    %200 = vector.shape_cast %199 : vector<8xf32> to vector<8x1xf32>
    %201 = arith.mulf %197, %6 : vector<8x64xf32>
    %cst_70 = arith.constant dense<0.000000e+00> : vector<8xf32>
    %202 = vector.multi_reduction <add>, %201, %cst_70 [1] : vector<8x64xf32> to vector<8xf32>
    %203 = vector.shape_cast %202 : vector<8xf32> to vector<8x1xf32>
    %204 = vector.broadcast %200 : vector<8x1xf32> to vector<8x64xf32>
    %205 = arith.mulf %204, %4 : vector<8x64xf32>
    %206 = vector.broadcast %203 : vector<8x1xf32> to vector<8x64xf32>
    %207 = arith.mulf %206, %6 : vector<8x64xf32>
    %208 = arith.addf %205, %207 : vector<8x64xf32>
    %cst_71 = arith.constant 3.125000e-02 : f32
    %209 = vector.broadcast %cst_71 : f32 to vector<8x64xf32>
    %210 = arith.mulf %208, %209 : vector<8x64xf32>
    %cst_72 = arith.constant 9.99999974E-6 : f32
    %211 = vector.broadcast %cst_72 : f32 to vector<8x64xf32>
    %212 = arith.addf %210, %211 : vector<8x64xf32>
    %213 = math.rsqrt %212 : vector<8x64xf32>
    %214 = arith.mulf %196, %213 : vector<8x64xf32>
    %215 = vector.broadcast %181 : vector<1x64xf32> to vector<8x64xf32>
    %216 = arith.mulf %214, %215 : vector<8x64xf32>
    %217 = vector.broadcast %182 : vector<1x64xf32> to vector<8x64xf32>
    %218 = arith.addf %216, %217 : vector<8x64xf32>
    %c3_73 = arith.constant 3 : index
    %c0_74 = arith.constant 0 : index
    %c0_75 = arith.constant 0 : index
    %219 = vector.load %arg2[%c3_73, %c0_74, %c0_75] : memref<6x64x128xf32, #tpu.memory_space<vmem>>, vector<1x64x64xf32>
    %220 = vector.shape_cast %219 : vector<1x64x64xf32> to vector<64x64xf32>
    %cst_76 = arith.constant dense<0.000000e+00> : vector<8x64xf32>
    %221 = tpu.matmul %218, %220, %cst_76 {dimension_numbers = #tpu.dot_dimension_numbers<[1], [0], [0], [1], [0, 0, 1, 1], [], []>} : vector<8x64xf32>, vector<64x64xf32>, vector<8x64xf32> -> vector<8x64xf32>
    %c16 = arith.constant 16 : index
    %c0_77 = arith.constant 0 : index
    %222 = vector.load %arg3[%c16, %c0_77] : memref<32x64xf32, #tpu.memory_space<vmem>>, vector<1x64xf32>
    %223 = vector.broadcast %222 : vector<1x64xf32> to vector<8x64xf32>
    %224 = arith.addf %221, %223 : vector<8x64xf32>
    %225 = arith.addf %218, %224 : vector<8x64xf32>
    %c17 = arith.constant 17 : index
    %c0_78 = arith.constant 0 : index
    %226 = vector.load %arg3[%c17, %c0_78] : memref<32x64xf32, #tpu.memory_space<vmem>>, vector<1x64xf32>
    %c18 = arith.constant 18 : index
    %c0_79 = arith.constant 0 : index
    %227 = vector.load %arg3[%c18, %c0_79] : memref<32x64xf32, #tpu.memory_space<vmem>>, vector<1x64xf32>
    %228 = arith.mulf %225, %4 : vector<8x64xf32>
    %cst_80 = arith.constant dense<0.000000e+00> : vector<8xf32>
    %229 = vector.multi_reduction <add>, %228, %cst_80 [1] : vector<8x64xf32> to vector<8xf32>
    %230 = vector.shape_cast %229 : vector<8xf32> to vector<8x1xf32>
    %231 = arith.mulf %225, %6 : vector<8x64xf32>
    %cst_81 = arith.constant dense<0.000000e+00> : vector<8xf32>
    %232 = vector.multi_reduction <add>, %231, %cst_81 [1] : vector<8x64xf32> to vector<8xf32>
    %233 = vector.shape_cast %232 : vector<8xf32> to vector<8x1xf32>
    %234 = vector.broadcast %230 : vector<8x1xf32> to vector<8x64xf32>
    %235 = arith.mulf %234, %4 : vector<8x64xf32>
    %236 = vector.broadcast %233 : vector<8x1xf32> to vector<8x64xf32>
    %237 = arith.mulf %236, %6 : vector<8x64xf32>
    %238 = arith.addf %235, %237 : vector<8x64xf32>
    %cst_82 = arith.constant 3.125000e-02 : f32
    %239 = vector.broadcast %cst_82 : f32 to vector<8x64xf32>
    %240 = arith.mulf %238, %239 : vector<8x64xf32>
    %241 = arith.subf %225, %240 : vector<8x64xf32>
    %242 = arith.mulf %241, %241 : vector<8x64xf32>
    %243 = arith.mulf %242, %4 : vector<8x64xf32>
    %cst_83 = arith.constant dense<0.000000e+00> : vector<8xf32>
    %244 = vector.multi_reduction <add>, %243, %cst_83 [1] : vector<8x64xf32> to vector<8xf32>
    %245 = vector.shape_cast %244 : vector<8xf32> to vector<8x1xf32>
    %246 = arith.mulf %242, %6 : vector<8x64xf32>
    %cst_84 = arith.constant dense<0.000000e+00> : vector<8xf32>
    %247 = vector.multi_reduction <add>, %246, %cst_84 [1] : vector<8x64xf32> to vector<8xf32>
    %248 = vector.shape_cast %247 : vector<8xf32> to vector<8x1xf32>
    %249 = vector.broadcast %245 : vector<8x1xf32> to vector<8x64xf32>
    %250 = arith.mulf %249, %4 : vector<8x64xf32>
    %251 = vector.broadcast %248 : vector<8x1xf32> to vector<8x64xf32>
    %252 = arith.mulf %251, %6 : vector<8x64xf32>
    %253 = arith.addf %250, %252 : vector<8x64xf32>
    %cst_85 = arith.constant 3.125000e-02 : f32
    %254 = vector.broadcast %cst_85 : f32 to vector<8x64xf32>
    %255 = arith.mulf %253, %254 : vector<8x64xf32>
    %cst_86 = arith.constant 9.99999974E-6 : f32
    %256 = vector.broadcast %cst_86 : f32 to vector<8x64xf32>
    %257 = arith.addf %255, %256 : vector<8x64xf32>
    %258 = math.rsqrt %257 : vector<8x64xf32>
    %259 = arith.mulf %241, %258 : vector<8x64xf32>
    %260 = vector.broadcast %226 : vector<1x64xf32> to vector<8x64xf32>
    %261 = arith.mulf %259, %260 : vector<8x64xf32>
    %262 = vector.broadcast %227 : vector<1x64xf32> to vector<8x64xf32>
    %263 = arith.addf %261, %262 : vector<8x64xf32>
    %c3_87 = arith.constant 3 : index
    %c0_88 = arith.constant 0 : index
    %c0_89 = arith.constant 0 : index
    %264 = vector.load %arg2[%c3_87, %c0_88, %c0_89] : memref<6x64x128xf32, #tpu.memory_space<vmem>>, vector<1x64x128xf32>
    %265 = vector.shape_cast %264 : vector<1x64x128xf32> to vector<64x128xf32>
    %cst_90 = arith.constant dense<0.000000e+00> : vector<8x128xf32>
    %266 = tpu.matmul %263, %265, %cst_90 {dimension_numbers = #tpu.dot_dimension_numbers<[1], [0], [0], [1], [0, 0, 1, 1], [], []>} : vector<8x64xf32>, vector<64x128xf32>, vector<8x128xf32> -> vector<8x128xf32>
    %267 = vector.extract_strided_slice %266 {offsets = [0, 64], sizes = [8, 64], strides = [1, 1]} : vector<8x128xf32> to vector<8x64xf32>
    %c19 = arith.constant 19 : index
    %c0_91 = arith.constant 0 : index
    %268 = vector.load %arg3[%c19, %c0_91] : memref<32x64xf32, #tpu.memory_space<vmem>>, vector<1x64xf32>
    %269 = vector.broadcast %268 : vector<1x64xf32> to vector<8x64xf32>
    %270 = arith.addf %267, %269 : vector<8x64xf32>
    %cst_92 = arith.constant 0.000000e+00 : f32
    %271 = vector.broadcast %cst_92 : f32 to vector<8x64xf32>
    %272 = arith.maximumf %270, %271 : vector<8x64xf32>
    %c4_93 = arith.constant 4 : index
    %c0_94 = arith.constant 0 : index
    %c0_95 = arith.constant 0 : index
    %273 = vector.load %arg2[%c4_93, %c0_94, %c0_95] : memref<6x64x128xf32, #tpu.memory_space<vmem>>, vector<1x64x64xf32>
    %274 = vector.shape_cast %273 : vector<1x64x64xf32> to vector<64x64xf32>
    %cst_96 = arith.constant dense<0.000000e+00> : vector<8x64xf32>
    %275 = tpu.matmul %272, %274, %cst_96 {dimension_numbers = #tpu.dot_dimension_numbers<[1], [0], [0], [1], [0, 0, 1, 1], [], []>} : vector<8x64xf32>, vector<64x64xf32>, vector<8x64xf32> -> vector<8x64xf32>
    %c20 = arith.constant 20 : index
    %c0_97 = arith.constant 0 : index
    %276 = vector.load %arg3[%c20, %c0_97] : memref<32x64xf32, #tpu.memory_space<vmem>>, vector<1x64xf32>
    %277 = vector.broadcast %276 : vector<1x64xf32> to vector<8x64xf32>
    %278 = arith.addf %275, %277 : vector<8x64xf32>
    %279 = arith.addf %263, %278 : vector<8x64xf32>
    %c21 = arith.constant 21 : index
    %c0_98 = arith.constant 0 : index
    %280 = vector.load %arg3[%c21, %c0_98] : memref<32x64xf32, #tpu.memory_space<vmem>>, vector<1x64xf32>
    %c22 = arith.constant 22 : index
    %c0_99 = arith.constant 0 : index
    %281 = vector.load %arg3[%c22, %c0_99] : memref<32x64xf32, #tpu.memory_space<vmem>>, vector<1x64xf32>
    %282 = arith.mulf %279, %4 : vector<8x64xf32>
    %cst_100 = arith.constant dense<0.000000e+00> : vector<8xf32>
    %283 = vector.multi_reduction <add>, %282, %cst_100 [1] : vector<8x64xf32> to vector<8xf32>
    %284 = vector.shape_cast %283 : vector<8xf32> to vector<8x1xf32>
    %285 = arith.mulf %279, %6 : vector<8x64xf32>
    %cst_101 = arith.constant dense<0.000000e+00> : vector<8xf32>
    %286 = vector.multi_reduction <add>, %285, %cst_101 [1] : vector<8x64xf32> to vector<8xf32>
    %287 = vector.shape_cast %286 : vector<8xf32> to vector<8x1xf32>
    %288 = vector.broadcast %284 : vector<8x1xf32> to vector<8x64xf32>
    %289 = arith.mulf %288, %4 : vector<8x64xf32>
    %290 = vector.broadcast %287 : vector<8x1xf32> to vector<8x64xf32>
    %291 = arith.mulf %290, %6 : vector<8x64xf32>
    %292 = arith.addf %289, %291 : vector<8x64xf32>
    %cst_102 = arith.constant 3.125000e-02 : f32
    %293 = vector.broadcast %cst_102 : f32 to vector<8x64xf32>
    %294 = arith.mulf %292, %293 : vector<8x64xf32>
    %295 = arith.subf %279, %294 : vector<8x64xf32>
    %296 = arith.mulf %295, %295 : vector<8x64xf32>
    %297 = arith.mulf %296, %4 : vector<8x64xf32>
    %cst_103 = arith.constant dense<0.000000e+00> : vector<8xf32>
    %298 = vector.multi_reduction <add>, %297, %cst_103 [1] : vector<8x64xf32> to vector<8xf32>
    %299 = vector.shape_cast %298 : vector<8xf32> to vector<8x1xf32>
    %300 = arith.mulf %296, %6 : vector<8x64xf32>
    %cst_104 = arith.constant dense<0.000000e+00> : vector<8xf32>
    %301 = vector.multi_reduction <add>, %300, %cst_104 [1] : vector<8x64xf32> to vector<8xf32>
    %302 = vector.shape_cast %301 : vector<8xf32> to vector<8x1xf32>
    %303 = vector.broadcast %299 : vector<8x1xf32> to vector<8x64xf32>
    %304 = arith.mulf %303, %4 : vector<8x64xf32>
    %305 = vector.broadcast %302 : vector<8x1xf32> to vector<8x64xf32>
    %306 = arith.mulf %305, %6 : vector<8x64xf32>
    %307 = arith.addf %304, %306 : vector<8x64xf32>
    %cst_105 = arith.constant 3.125000e-02 : f32
    %308 = vector.broadcast %cst_105 : f32 to vector<8x64xf32>
    %309 = arith.mulf %307, %308 : vector<8x64xf32>
    %cst_106 = arith.constant 9.99999974E-6 : f32
    %310 = vector.broadcast %cst_106 : f32 to vector<8x64xf32>
    %311 = arith.addf %309, %310 : vector<8x64xf32>
    %312 = math.rsqrt %311 : vector<8x64xf32>
    %313 = arith.mulf %295, %312 : vector<8x64xf32>
    %314 = vector.broadcast %280 : vector<1x64xf32> to vector<8x64xf32>
    %315 = arith.mulf %313, %314 : vector<8x64xf32>
    %316 = vector.broadcast %281 : vector<1x64xf32> to vector<8x64xf32>
    %317 = arith.addf %315, %316 : vector<8x64xf32>
    %c4_107 = arith.constant 4 : index
    %c0_108 = arith.constant 0 : index
    %c0_109 = arith.constant 0 : index
    %318 = vector.load %arg2[%c4_107, %c0_108, %c0_109] : memref<6x64x128xf32, #tpu.memory_space<vmem>>, vector<1x64x128xf32>
    %319 = vector.shape_cast %318 : vector<1x64x128xf32> to vector<64x128xf32>
    %cst_110 = arith.constant dense<0.000000e+00> : vector<8x128xf32>
    %320 = tpu.matmul %317, %319, %cst_110 {dimension_numbers = #tpu.dot_dimension_numbers<[1], [0], [0], [1], [0, 0, 1, 1], [], []>} : vector<8x64xf32>, vector<64x128xf32>, vector<8x128xf32> -> vector<8x128xf32>
    %321 = vector.extract_strided_slice %320 {offsets = [0, 64], sizes = [8, 64], strides = [1, 1]} : vector<8x128xf32> to vector<8x64xf32>
    %c7 = arith.constant 7 : index
    %c0_111 = arith.constant 0 : index
    %322 = vector.load %arg3[%c7, %c0_111] : memref<32x64xf32, #tpu.memory_space<vmem>>, vector<1x64xf32>
    %323 = vector.broadcast %322 : vector<1x64xf32> to vector<8x64xf32>
    %324 = arith.addf %321, %323 : vector<8x64xf32>
    %cst_112 = arith.constant 0.000000e+00 : f32
    %325 = vector.broadcast %cst_112 : f32 to vector<8x64xf32>
    %326 = arith.maximumf %324, %325 : vector<8x64xf32>
    %c5_113 = arith.constant 5 : index
    %c0_114 = arith.constant 0 : index
    %c0_115 = arith.constant 0 : index
    %327 = vector.load %arg2[%c5_113, %c0_114, %c0_115] : memref<6x64x128xf32, #tpu.memory_space<vmem>>, vector<1x64x64xf32>
    %328 = vector.shape_cast %327 : vector<1x64x64xf32> to vector<64x64xf32>
    %cst_116 = arith.constant dense<0.000000e+00> : vector<8x64xf32>
    %329 = tpu.matmul %326, %328, %cst_116 {dimension_numbers = #tpu.dot_dimension_numbers<[1], [0], [0], [1], [0, 0, 1, 1], [], []>} : vector<8x64xf32>, vector<64x64xf32>, vector<8x64xf32> -> vector<8x64xf32>
    %c15 = arith.constant 15 : index
    %c0_117 = arith.constant 0 : index
    %330 = vector.load %arg3[%c15, %c0_117] : memref<32x64xf32, #tpu.memory_space<vmem>>, vector<1x64xf32>
    %331 = vector.broadcast %330 : vector<1x64xf32> to vector<8x64xf32>
    %332 = arith.addf %329, %331 : vector<8x64xf32>
    %cst_118 = arith.constant 0.000000e+00 : f32
    %333 = vector.broadcast %cst_118 : f32 to vector<8x64xf32>
    %334 = arith.maximumf %332, %333 : vector<8x64xf32>
    %c5_119 = arith.constant 5 : index
    %c0_120 = arith.constant 0 : index
    %c0_121 = arith.constant 0 : index
    %335 = vector.load %arg2[%c5_119, %c0_120, %c0_121] : memref<6x64x128xf32, #tpu.memory_space<vmem>>, vector<1x64x128xf32>
    %336 = vector.shape_cast %335 : vector<1x64x128xf32> to vector<64x128xf32>
    %cst_122 = arith.constant dense<0.000000e+00> : vector<8x128xf32>
    %337 = tpu.matmul %334, %336, %cst_122 {dimension_numbers = #tpu.dot_dimension_numbers<[1], [0], [0], [1], [0, 0, 1, 1], [], []>} : vector<8x64xf32>, vector<64x128xf32>, vector<8x128xf32> -> vector<8x128xf32>
    %338 = vector.extract_strided_slice %337 {offsets = [0, 64], sizes = [8, 64], strides = [1, 1]} : vector<8x128xf32> to vector<8x64xf32>
    %c23 = arith.constant 23 : index
    %c0_123 = arith.constant 0 : index
    %339 = vector.load %arg3[%c23, %c0_123] : memref<32x64xf32, #tpu.memory_space<vmem>>, vector<1x64xf32>
    %340 = vector.broadcast %339 : vector<1x64xf32> to vector<8x64xf32>
    %341 = arith.addf %338, %340 : vector<8x64xf32>
    %cst_124 = arith.constant 0.000000e+00 : f32
    %342 = vector.broadcast %cst_124 : f32 to vector<8x64xf32>
    %343 = arith.maximumf %341, %342 : vector<8x64xf32>
    %c24 = arith.constant 24 : index
    %c0_125 = arith.constant 0 : index
    %344 = vector.load %arg3[%c24, %c0_125] : memref<32x64xf32, #tpu.memory_space<vmem>>, vector<1x64xf32>
    %345 = vector.broadcast %344 : vector<1x64xf32> to vector<8x64xf32>
    %346 = arith.mulf %343, %345 : vector<8x64xf32>
    %cst_126 = arith.constant dense<0.000000e+00> : vector<8xf32>
    %347 = vector.multi_reduction <add>, %346, %cst_126 [1] : vector<8x64xf32> to vector<8xf32>
    %348 = vector.shape_cast %347 : vector<8xf32> to vector<8x1xf32>
    %c25 = arith.constant 25 : index
    %c0_127 = arith.constant 0 : index
    %349 = vector.load %arg3[%c25, %c0_127] : memref<32x64xf32, #tpu.memory_space<vmem>>, vector<1x1xf32>
    %350 = vector.broadcast %349 : vector<1x1xf32> to vector<8x1xf32>
    %351 = arith.addf %348, %350 : vector<8x1xf32>
    %c0_128 = arith.constant 0 : index
    %c0_129 = arith.constant 0 : index
    %352 = vector.load %arg4[%c0_128, %c0_129] : memref<8x1xf32, #tpu.memory_space<vmem>>, vector<8x1xf32>
    tpu.vector_store %arg4[%c0_128, %c0_129], %351 {strides = array<i32>} : memref<8x1xf32, #tpu.memory_space<vmem>>, vector<8x1xf32>,
    return
  }
}

</mosaic_0001>

<llo_original>
// kernel: ncf_att_forward.1
$region0: #{ncf_att_forward.1}
  #allocation0 [shape = 'u32[]', space=smem, size = 0x4, offset = 0x4, fixed_abs, tag = 'smem constant byte address 0x4 - core index']
  #allocation1 [shape = 'u32[72,128]{1,0:T(1,128)}', space=vmem, size = 0x9000, scoped, tag = 'internal scratch']
  %s0 = inlined_call_operand.vmem [shape: s32[8,2], index: 0, kind: input, shape index: {}]
  %s1 = inlined_call_operand.vmem [shape: f32[80,64], index: 1, kind: input, shape index: {}]
  %s2 = inlined_call_operand.hbm [shape: f32[6,64,128], index: 2, kind: input, shape index: {}]
  %s3 = inlined_call_operand.vmem [shape: f32[32,64], index: 3, kind: input, shape index: {}]
  %s4 = inlined_call_operand.vmem [shape: f32[8,1], index: 4, kind: output, shape index: {}]
  %s5 = sld [smem:[#allocation0]]
  $region30: #{ncf_att_forward.1} parent=0
    _
  %s7 = ssub.s32 1, %s5
  %s8 = scalar_select 0, %s7, %s5
  $region1: #{ncf_att_forward.1} parent=0
    #allocation2 [shape = 'u8[196608]{0}', space=vmem, size = 0x30000, scoped, tag = 'input window, operand 2, single buffered']
    #allocation3 [shape = 's32[1]{0}', space=sflag, size = 0x4, scoped, tag = 'scoped memory for ncf_att_forward.1']
    %9 = vsyncpa [#allocation3], 0
    // Predicated region
    $region2: #{ncf_att_forward.1} parent=1 // pred_check
      _
    $region3: #{ncf_att_forward.1} parent=1 // pred_check_branch
      %11 = sbr.rel (0) target = $region5
    $region4: #{ncf_att_forward.1} parent=1 // pred_region
      _
    $region5: #{ncf_att_forward.1} parent=1 // pred_fallthru
      _
    // Predicated region
    $region6: #{ncf_att_forward.1} parent=1 // pred_check
      _
    $region7: #{ncf_att_forward.1} parent=1 // pred_check_branch
      %13 = sbr.rel (0) target = $region9
    $region8: #{ncf_att_forward.1} parent=1 // pred_region
      _
    $region9: #{ncf_att_forward.1} parent=1 // pred_fallthru
      _
    // Predicated region
    $region10: #{ncf_att_forward.1} parent=1 // pred_check
      _
    $region11: #{ncf_att_forward.1} parent=1 // pred_check_branch
      %15 = sbr.rel (0) target = $region13
    $region12: #{ncf_att_forward.1} parent=1 // pred_region
      %17 = vsyncadd [#allocation3], 0
      %s18 = sshll.u32 %s2, 4
      %s19 = int_to_ptr.hbm [resolvable:$true] %s18
      %s20 = sshll.u32 [#allocation2], 4
      %s21 = int_to_ptr.vmem [resolvable:$true] %s20
      %26 = dma.hbm_to_vmem [thread:$0]  %s19, 6144, %s21, [#allocation3], 128, 128, 8
    $region13: #{ncf_att_forward.1} parent=1 // pred_fallthru
      _
    // Predicated region
    $region14: #{ncf_att_forward.1} parent=1 // pred_check
      _
    $region15: #{ncf_att_forward.1} parent=1 // pred_check_branch
      %28 = sbr.rel (0) target = $region17
    $region16: #{ncf_att_forward.1} parent=1 // pred_region
      _
    $region17: #{ncf_att_forward.1} parent=1 // pred_fallthru
      _
    // Predicated region
    $region18: #{ncf_att_forward.1} parent=1 // pred_check
      _
    $region19: #{ncf_att_forward.1} parent=1 // pred_check_branch
      %30 = sbr.rel (0) target = $region21
    $region20: #{ncf_att_forward.1} parent=1 // pred_region
      %32 = dma.done [#allocation3], 6144
    $region21: #{ncf_att_forward.1} parent=1 // pred_fallthru
      _
    %v33 = vlaneseq
    %v34 = vand.u32 %v33, 127
    %vm35 = vcmp.lt.s32.totalorder %v34, 32
    %v36 = vsel %vm35, 1, 0
    %v37 = vcvt.s32.f32 %v36
    %v38 = vsub.f32 1.0, %v37
    %v39 = vld [vmem:[%s0] sm:$0xff]
    %40 = vset.pattern.permute.xlu0 0
    %41 = vperm.xlu0 %40, %v39
    %v42 = vpop.permute.xlu0 %41
    %vm43 = vcmp.eq.s32.totalorder %v34, %v42
    %44 = vset.pattern.permute.xlu0 1
    %45 = vperm.xlu0 %44, %v39
    %v46 = vpop.permute.xlu0 %45
    %vm47 = vcmp.eq.s32.totalorder %v34, %v46
    %vm48 = vmor %vm43, %vm47
    %v49 = vsel %vm48, 1, 0
    %v50 = vcvt.s32.f32 %v49
    %v51 = vld [vmem:[%s1] sm:$0xff]
    %v52 = vld [vmem:[%s1 + $0x8] sm:$0xff]
    %v53 = vld [vmem:[%s1 + $0x10] sm:$0xff]
    %v54 = vld [vmem:[%s1 + $0x18] sm:$0xff]
    %v55 = vld [vmem:[%s1 + $0x20] sm:$0xff]
    %v56 = vld [vmem:[%s1 + $0x28] sm:$0xff]
    %v57 = vld [vmem:[%s1 + $0x30] sm:$0xff]
    %v58 = vld [vmem:[%s1 + $0x38] sm:$0xff]
    %v59 = vld [vmem:[%s1 + $0x40] sm:$0xff]
    %v60 = vld [vmem:[%s1 + $0x48] sm:$0xff]
    %vm61 = vcmask 654336
    %v63 = vsel %vm61, %v50, 0
    %65 = vmatpush.msra.mxu0 0.0
    %66 = vmatpush.msra.mxu0 0.0
    %67 = vmatpush.msra.mxu0 0.0
    %68 = vmatpush.msra.mxu0 0.0
    %69 = vmatpush.msra.mxu0 0.0
    %70 = vmatpush.msra.mxu0 0.0
    %71 = vmatpush.msra.mxu0 %v60
    %72 = vmatpush.msra.mxu0 %v59
    %73 = vmatpush.msra.mxu0 %v58
    %74 = vmatpush.msra.mxu0 %v57
    %75 = vmatpush.msra.mxu0 %v56
    %76 = vmatpush.msra.mxu0 %v55
    %77 = vmatpush.msra.mxu0 %v54
    %78 = vmatpush.msra.mxu0 %v53
    %79 = vmatpush.msra.mxu0 %v52
    %80 = vmatpush.msra.mxu0 %v51
    %81 = vmatmul.f32.gmra.mxu0 %v63
    %v82 = vpop.f32.mrf.mxu0
    %v83 = vadd.f32 0.0, %v82
    %84 = vdwg.mxu0
    %v85 = vld [vmem:[#allocation2] sm:$0xff]
    %v86 = vld [vmem:[#allocation2 + $0x8] sm:$0xff]
    %v87 = vld [vmem:[#allocation2 + $0x10] sm:$0xff]
    %v88 = vld [vmem:[#allocation2 + $0x18] sm:$0xff]
    %v89 = vld [vmem:[#allocation2 + $0x20] sm:$0xff]
    %v90 = vld [vmem:[#allocation2 + $0x28] sm:$0xff]
    %v91 = vld [vmem:[#allocation2 + $0x30] sm:$0xff]
    %v92 = vld [vmem:[#allocation2 + $0x38] sm:$0xff]
    %v93 = vld [vmem:[%s3] sm:$0x1]
    %v94 = vperm.slane %v93, 0
    %vm95 = vcmask 523264
    %v97 = vsel %vm95, %v83, 0
    %99 = vmatpush.msra.mxu0 0.0
    %100 = vmatpush.msra.mxu0 0.0
    %101 = vmatpush.msra.mxu0 0.0
    %102 = vmatpush.msra.mxu0 0.0
    %103 = vmatpush.msra.mxu0 0.0
    %104 = vmatpush.msra.mxu0 0.0
    %105 = vmatpush.msra.mxu0 0.0
    %106 = vmatpush.msra.mxu0 0.0
    %107 = vmatpush.msra.mxu0 %v92
    %108 = vmatpush.msra.mxu0 %v91
    %109 = vmatpush.msra.mxu0 %v90
    %110 = vmatpush.msra.mxu0 %v89
    %111 = vmatpush.msra.mxu0 %v88
    %112 = vmatpush.msra.mxu0 %v87
    %113 = vmatpush.msra.mxu0 %v86
    %114 = vmatpush.msra.mxu0 %v85
    %115 = vmatmul.f32.gmra.mxu0 %v97
    %v116 = vpop.f32.mrf.mxu0
    %v117 = vadd.f32 %v94, %v116
    %118 = vdwg.mxu0
    %v119 = vadd.f32 %v83, %v117
    %v120 = vld [vmem:[%s3 + $0x1] sm:$0x1]
    %v121 = vld [vmem:[%s3 + $0x2] sm:$0x1]
    %v122 = vmul.f32 %v119, %v37
    %v123 = vsel %vm95, %v122, 0.0
    %124 = vadd.xlane.f32.xlu0 %v123
    %v125 = vpop.xlane.xlu0 %124
    %v126 = vmul.f32 %v119, %v38
    %v127 = vsel %vm95, %v126, 0.0
    %128 = vadd.xlane.f32.xlu0 %v127
    %v129 = vpop.xlane.xlu0 %128
    %v130 = vmul.f32 %v125, %v37
    %v131 = vmul.f32 %v129, %v38
    %v132 = vadd.f32 %v130, %v131
    %v133 = vmul.f32 %v132, 0.03125
    %v134 = vsub.f32 %v119, %v133
    %v135 = vmul.f32 %v134, %v134
    %v136 = vmul.f32 %v135, %v37
    %v137 = vsel %vm95, %v136, 0.0
    %138 = vadd.xlane.f32.xlu0 %v137
    %v139 = vpop.xlane.xlu0 %138
    %v140 = vmul.f32 %v135, %v38
    %v141 = vsel %vm95, %v140, 0.0
    %142 = vadd.xlane.f32.xlu0 %v141
    %v143 = vpop.xlane.xlu0 %142
    %v144 = vmul.f32 %v139, %v37
    %v145 = vmul.f32 %v143, %v38
    %v146 = vadd.f32 %v144, %v145
    %v147 = vmul.f32 %v146, 0.03125
    %v148 = vadd.f32 %v147, 1e-05
    %v149 = vrsqrt.pop %v148
    %v150 = vmul.f32 %v149, %v148
    %v151 = vmul.f32 %v150, %v149
    %v152 = vmul.f32 0.5, %v151
    %v153 = vsub.f32 1.5, %v152
    %v154 = vmul.f32 %v149, %v153
    %vm155 = vweird.f32 %v148
    %vm156 = vweird.f32 %v149
    %vm157 = vmor %vm155, %vm156
    %v158 = vsel %vm157, %v149, %v154
    %v159 = vmul.f32 %v134, %v158
    %v160 = vperm.slane %v120, 0
    %v161 = vmul.f32 %v159, %v160
    %v162 = vperm.slane %v121, 0
    %v163 = vadd.f32 %v161, %v162
    %v165 = vsel %vm95, %v163, 0
    %167 = vmatpush.msra.mxu0 0.0
    %168 = vmatpush.msra.mxu0 0.0
    %169 = vmatpush.msra.mxu0 0.0
    %170 = vmatpush.msra.mxu0 0.0
    %171 = vmatpush.msra.mxu0 0.0
    %172 = vmatpush.msra.mxu0 0.0
    %173 = vmatpush.msra.mxu0 0.0
    %174 = vmatpush.msra.mxu0 0.0
    %175 = vmatpush.msra.mxu0 %v92
    %176 = vmatpush.msra.mxu0 %v91
    %177 = vmatpush.msra.mxu0 %v90
    %178 = vmatpush.msra.mxu0 %v89
    %179 = vmatpush.msra.mxu0 %v88
    %180 = vmatpush.msra.mxu0 %v87
    %181 = vmatpush.msra.mxu0 %v86
    %182 = vmatpush.msra.mxu0 %v85
    %183 = vmatmul.f32.gmra.mxu0 %v165
    %v184 = vpop.f32.mrf.mxu0
    %v185 = vadd.f32 0.0, %v184
    %186 = vdwg.mxu0
    %v187 = vld [vmem:[%s3 + $0x3] sm:$0x1]
    %v188 = vperm.slane %v187, 0
    %190 = vrot.lane.b32.xlu0 %v188, 64
    %v191 = vpop.permute.xlu0 %190
    %v193 = vadd.f32 %v185, %v191
    %v194 = vmax.f32 %v193, 0.0
    %s195 = scalar_lea.vmem [#allocation2], 64
    %v196 = vld [vmem:[%s195] sm:$0xff]
    %v197 = vld [vmem:[%s195 + $0x8] sm:$0xff]
    %v198 = vld [vmem:[%s195 + $0x10] sm:$0xff]
    %v199 = vld [vmem:[%s195 + $0x18] sm:$0xff]
    %v200 = vld [vmem:[%s195 + $0x20] sm:$0xff]
    %v201 = vld [vmem:[%s195 + $0x28] sm:$0xff]
    %v202 = vld [vmem:[%s195 + $0x30] sm:$0xff]
    %v203 = vld [vmem:[%s195 + $0x38] sm:$0xff]
    %v204 = vld [vmem:[%s3 + $0x4] sm:$0x1]
    %v205 = vperm.slane %v204, 0
    %207 = vrot.lane.b32.xlu0 %v194, 64
    %v208 = vpop.permute.xlu0 %207
    %v209 = vsel %vm95, %v208, 0
    %211 = vmatpush.msra.mxu0 0.0
    %212 = vmatpush.msra.mxu0 0.0
    %213 = vmatpush.msra.mxu0 0.0
    %214 = vmatpush.msra.mxu0 0.0
    %215 = vmatpush.msra.mxu0 0.0
    %216 = vmatpush.msra.mxu0 0.0
    %217 = vmatpush.msra.mxu0 0.0
    %218 = vmatpush.msra.mxu0 0.0
    %219 = vmatpush.msra.mxu0 %v203
    %220 = vmatpush.msra.mxu0 %v202
    %221 = vmatpush.msra.mxu0 %v201
    %222 = vmatpush.msra.mxu0 %v200
    %223 = vmatpush.msra.mxu0 %v199
    %224 = vmatpush.msra.mxu0 %v198
    %225 = vmatpush.msra.mxu0 %v197
    %226 = vmatpush.msra.mxu0 %v196
    %227 = vmatmul.f32.gmra.mxu0 %v209
    %v228 = vpop.f32.mrf.mxu0
    %v229 = vadd.f32 %v205, %v228
    %230 = vdwg.mxu0
    %v231 = vadd.f32 %v163, %v229
    %v232 = vld [vmem:[%s3 + $0x5] sm:$0x1]
    %v233 = vld [vmem:[%s3 + $0x6] sm:$0x1]
    %v234 = vmul.f32 %v231, %v37
    %v235 = vsel %vm95, %v234, 0.0
    %236 = vadd.xlane.f32.xlu0 %v235
    %v237 = vpop.xlane.xlu0 %236
    %v238 = vmul.f32 %v231, %v38
    %v239 = vsel %vm95, %v238, 0.0
    %240 = vadd.xlane.f32.xlu0 %v239
    %v241 = vpop.xlane.xlu0 %240
    %v242 = vmul.f32 %v237, %v37
    %v243 = vmul.f32 %v241, %v38
    %v244 = vadd.f32 %v242, %v243
    %v245 = vmul.f32 %v244, 0.03125
    %v246 = vsub.f32 %v231, %v245
    %v247 = vmul.f32 %v246, %v246
    %v248 = vmul.f32 %v247, %v37
    %v249 = vsel %vm95, %v248, 0.0
    %250 = vadd.xlane.f32.xlu0 %v249
    %v251 = vpop.xlane.xlu0 %250
    %v252 = vmul.f32 %v247, %v38
    %v253 = vsel %vm95, %v252, 0.0
    %254 = vadd.xlane.f32.xlu0 %v253
    %v255 = vpop.xlane.xlu0 %254
    %v256 = vmul.f32 %v251, %v37
    %v257 = vmul.f32 %v255, %v38
    %v258 = vadd.f32 %v256, %v257
    %v259 = vmul.f32 %v258, 0.03125
    %v260 = vadd.f32 %v259, 1e-05
    %v261 = vrsqrt.pop %v260
    %v262 = vmul.f32 %v261, %v260
    %v263 = vmul.f32 %v262, %v261
    %v264 = vmul.f32 0.5, %v263
    %v265 = vsub.f32 1.5, %v264
    %v266 = vmul.f32 %v261, %v265
    %vm267 = vweird.f32 %v260
    %vm268 = vweird.f32 %v261
    %vm269 = vmor %vm267, %vm268
    %v270 = vsel %vm269, %v261, %v266
    %v271 = vmul.f32 %v246, %v270
    %v272 = vperm.slane %v232, 0
    %v273 = vmul.f32 %v271, %v272
    %v274 = vperm.slane %v233, 0
    %v275 = vadd.f32 %v273, %v274
    %v277 = vsel %vm95, %v275, 0
    %279 = vmatpush.msra.mxu0 0.0
    %280 = vmatpush.msra.mxu0 0.0
    %281 = vmatpush.msra.mxu0 0.0
    %282 = vmatpush.msra.mxu0 0.0
    %283 = vmatpush.msra.mxu0 0.0
    %284 = vmatpush.msra.mxu0 0.0
    %285 = vmatpush.msra.mxu0 0.0
    %286 = vmatpush.msra.mxu0 0.0
    %287 = vmatpush.msra.mxu0 %v203
    %288 = vmatpush.msra.mxu0 %v202
    %289 = vmatpush.msra.mxu0 %v201
    %290 = vmatpush.msra.mxu0 %v200
    %291 = vmatpush.msra.mxu0 %v199
    %292 = vmatpush.msra.mxu0 %v198
    %293 = vmatpush.msra.mxu0 %v197
    %294 = vmatpush.msra.mxu0 %v196
    %295 = vmatmul.f32.gmra.mxu0 %v277
    %v296 = vpop.f32.mrf.mxu0
    %v297 = vadd.f32 0.0, %v296
    %298 = vdwg.mxu0
    %v299 = vld [vmem:[%s3 + $0x8] sm:$0x1]
    %v300 = vperm.slane %v299, 0
    %302 = vrot.lane.b32.xlu0 %v300, 64
    %v303 = vpop.permute.xlu0 %302
    %v305 = vadd.f32 %v297, %v303
    %307 = vrot.lane.b32.xlu0 %v305, 64
    %v308 = vpop.permute.xlu0 %307
    %v310 = vadd.f32 %v275, %v308
    %v311 = vld [vmem:[%s3 + $0x9] sm:$0x1]
    %v312 = vld [vmem:[%s3 + $0xa] sm:$0x1]
    %v313 = vmul.f32 %v310, %v37
    %v314 = vsel %vm95, %v313, 0.0
    %315 = vadd.xlane.f32.xlu0 %v314
    %v316 = vpop.xlane.xlu0 %315
    %v317 = vmul.f32 %v310, %v38
    %v318 = vsel %vm95, %v317, 0.0
    %319 = vadd.xlane.f32.xlu0 %v318
    %v320 = vpop.xlane.xlu0 %319
    %v321 = vmul.f32 %v316, %v37
    %v322 = vmul.f32 %v320, %v38
    %v323 = vadd.f32 %v321, %v322
    %v324 = vmul.f32 %v323, 0.03125
    %v325 = vsub.f32 %v310, %v324
    %v326 = vmul.f32 %v325, %v325
    %v327 = vmul.f32 %v326, %v37
    %v328 = vsel %vm95, %v327, 0.0
    %329 = vadd.xlane.f32.xlu0 %v328
    %v330 = vpop.xlane.xlu0 %329
    %v331 = vmul.f32 %v326, %v38
    %v332 = vsel %vm95, %v331, 0.0
    %333 = vadd.xlane.f32.xlu0 %v332
    %v334 = vpop.xlane.xlu0 %333
    %v335 = vmul.f32 %v330, %v37
    %v336 = vmul.f32 %v334, %v38
    %v337 = vadd.f32 %v335, %v336
    %v338 = vmul.f32 %v337, 0.03125
    %v339 = vadd.f32 %v338, 1e-05
    %v340 = vrsqrt.pop %v339
    %v341 = vmul.f32 %v340, %v339
    %v342 = vmul.f32 %v341, %v340
    %v343 = vmul.f32 0.5, %v342
    %v344 = vsub.f32 1.5, %v343
    %v345 = vmul.f32 %v340, %v344
    %vm346 = vweird.f32 %v339
    %vm347 = vweird.f32 %v340
    %vm348 = vmor %vm346, %vm347
    %v349 = vsel %vm348, %v340, %v345
    %v350 = vmul.f32 %v325, %v349
    %v351 = vperm.slane %v311, 0
    %v352 = vmul.f32 %v350, %v351
    %v353 = vperm.slane %v312, 0
    %v354 = vadd.f32 %v352, %v353
    %s355 = scalar_lea.vmem [#allocation2], 128
    %v356 = vld [vmem:[%s355] sm:$0xff]
    %v357 = vld [vmem:[%s355 + $0x8] sm:$0xff]
    %v358 = vld [vmem:[%s355 + $0x10] sm:$0xff]
    %v359 = vld [vmem:[%s355 + $0x18] sm:$0xff]
    %v360 = vld [vmem:[%s355 + $0x20] sm:$0xff]
    %v361 = vld [vmem:[%s355 + $0x28] sm:$0xff]
    %v362 = vld [vmem:[%s355 + $0x30] sm:$0xff]
    %v363 = vld [vmem:[%s355 + $0x38] sm:$0xff]
    %v364 = vld [vmem:[%s3 + $0xb] sm:$0x1]
    %v365 = vperm.slane %v364, 0
    %v367 = vsel %vm95, %v354, 0
    %369 = vmatpush.msra.mxu0 0.0
    %370 = vmatpush.msra.mxu0 0.0
    %371 = vmatpush.msra.mxu0 0.0
    %372 = vmatpush.msra.mxu0 0.0
    %373 = vmatpush.msra.mxu0 0.0
    %374 = vmatpush.msra.mxu0 0.0
    %375 = vmatpush.msra.mxu0 0.0
    %376 = vmatpush.msra.mxu0 0.0
    %377 = vmatpush.msra.mxu0 %v363
    %378 = vmatpush.msra.mxu0 %v362
    %379 = vmatpush.msra.mxu0 %v361
    %380 = vmatpush.msra.mxu0 %v360
    %381 = vmatpush.msra.mxu0 %v359
    %382 = vmatpush.msra.mxu0 %v358
    %383 = vmatpush.msra.mxu0 %v357
    %384 = vmatpush.msra.mxu0 %v356
    %385 = vmatmul.f32.gmra.mxu0 %v367
    %v386 = vpop.f32.mrf.mxu0
    %v387 = vadd.f32 %v365, %v386
    %388 = vdwg.mxu0
    %v389 = vmax.f32 %v387, 0.0
    %v391 = vsel %vm95, %v389, 0
    %393 = vmatpush.msra.mxu0 0.0
    %394 = vmatpush.msra.mxu0 0.0
    %395 = vmatpush.msra.mxu0 0.0
    %396 = vmatpush.msra.mxu0 0.0
    %397 = vmatpush.msra.mxu0 0.0
    %398 = vmatpush.msra.mxu0 0.0
    %399 = vmatpush.msra.mxu0 0.0
    %400 = vmatpush.msra.mxu0 0.0
    %401 = vmatpush.msra.mxu0 %v363
    %402 = vmatpush.msra.mxu0 %v362
    %403 = vmatpush.msra.mxu0 %v361
    %404 = vmatpush.msra.mxu0 %v360
    %405 = vmatpush.msra.mxu0 %v359
    %406 = vmatpush.msra.mxu0 %v358
    %407 = vmatpush.msra.mxu0 %v357
    %408 = vmatpush.msra.mxu0 %v356
    %409 = vmatmul.f32.gmra.mxu0 %v391
    %v410 = vpop.f32.mrf.mxu0
    %v411 = vadd.f32 0.0, %v410
    %412 = vdwg.mxu0
    %v413 = vld [vmem:[%s3 + $0xc] sm:$0x1]
    %v414 = vperm.slane %v413, 0
    %416 = vrot.lane.b32.xlu0 %v414, 64
    %v417 = vpop.permute.xlu0 %416
    %v419 = vadd.f32 %v411, %v417
    %421 = vrot.lane.b32.xlu0 %v419, 64
    %v422 = vpop.permute.xlu0 %421
    %v424 = vadd.f32 %v354, %v422
    %v425 = vld [vmem:[%s3 + $0xd] sm:$0x1]
    %v426 = vld [vmem:[%s3 + $0xe] sm:$0x1]
    %v427 = vmul.f32 %v424, %v37
    %v428 = vsel %vm95, %v427, 0.0
    %429 = vadd.xlane.f32.xlu0 %v428
    %v430 = vpop.xlane.xlu0 %429
    %v431 = vmul.f32 %v424, %v38
    %v432 = vsel %vm95, %v431, 0.0
    %433 = vadd.xlane.f32.xlu0 %v432
    %v434 = vpop.xlane.xlu0 %433
    %v435 = vmul.f32 %v430, %v37
    %v436 = vmul.f32 %v434, %v38
    %v437 = vadd.f32 %v435, %v436
    %v438 = vmul.f32 %v437, 0.03125
    %v439 = vsub.f32 %v424, %v438
    %v440 = vmul.f32 %v439, %v439
    %v441 = vmul.f32 %v440, %v37
    %v442 = vsel %vm95, %v441, 0.0
    %443 = vadd.xlane.f32.xlu0 %v442
    %v444 = vpop.xlane.xlu0 %443
    %v445 = vmul.f32 %v440, %v38
    %v446 = vsel %vm95, %v445, 0.0
    %447 = vadd.xlane.f32.xlu0 %v446
    %v448 = vpop.xlane.xlu0 %447
    %v449 = vmul.f32 %v444, %v37
    %v450 = vmul.f32 %v448, %v38
    %v451 = vadd.f32 %v449, %v450
    %v452 = vmul.f32 %v451, 0.03125
    %v453 = vadd.f32 %v452, 1e-05
    %v454 = vrsqrt.pop %v453
    %v455 = vmul.f32 %v454, %v453
    %v456 = vmul.f32 %v455, %v454
    %v457 = vmul.f32 0.5, %v456
    %v458 = vsub.f32 1.5, %v457
    %v459 = vmul.f32 %v454, %v458
    %vm460 = vweird.f32 %v453
    %vm461 = vweird.f32 %v454
    %vm462 = vmor %vm460, %vm461
    %v463 = vsel %vm462, %v454, %v459
    %v464 = vmul.f32 %v439, %v463
    %v465 = vperm.slane %v425, 0
    %v466 = vmul.f32 %v464, %v465
    %v467 = vperm.slane %v426, 0
    %v468 = vadd.f32 %v466, %v467
    %s469 = scalar_lea.vmem [#allocation2], 192
    %v470 = vld [vmem:[%s469] sm:$0xff]
    %v471 = vld [vmem:[%s469 + $0x8] sm:$0xff]
    %v472 = vld [vmem:[%s469 + $0x10] sm:$0xff]
    %v473 = vld [vmem:[%s469 + $0x18] sm:$0xff]
    %v474 = vld [vmem:[%s469 + $0x20] sm:$0xff]
    %v475 = vld [vmem:[%s469 + $0x28] sm:$0xff]
    %v476 = vld [vmem:[%s469 + $0x30] sm:$0xff]
    %v477 = vld [vmem:[%s469 + $0x38] sm:$0xff]
    %v478 = vld [vmem:[%s3 + $0x10] sm:$0x1]
    %v479 = vperm.slane %v478, 0
    %v481 = vsel %vm95, %v468, 0
    %483 = vmatpush.msra.mxu0 0.0
    %484 = vmatpush.msra.mxu0 0.0
    %485 = vmatpush.msra.mxu0 0.0
    %486 = vmatpush.msra.mxu0 0.0
    %487 = vmatpush.msra.mxu0 0.0
    %488 = vmatpush.msra.mxu0 0.0
    %489 = vmatpush.msra.mxu0 0.0
    %490 = vmatpush.msra.mxu0 0.0
    %491 = vmatpush.msra.mxu0 %v477
    %492 = vmatpush.msra.mxu0 %v476
    %493 = vmatpush.msra.mxu0 %v475
    %494 = vmatpush.msra.mxu0 %v474
    %495 = vmatpush.msra.mxu0 %v473
    %496 = vmatpush.msra.mxu0 %v472
    %497 = vmatpush.msra.mxu0 %v471
    %498 = vmatpush.msra.mxu0 %v470
    %499 = vmatmul.f32.gmra.mxu0 %v481
    %v500 = vpop.f32.mrf.mxu0
    %v501 = vadd.f32 %v479, %v500
    %502 = vdwg.mxu0
    %v503 = vadd.f32 %v468, %v501
    %v504 = vld [vmem:[%s3 + $0x11] sm:$0x1]
    %v505 = vld [vmem:[%s3 + $0x12] sm:$0x1]
    %v506 = vmul.f32 %v503, %v37
    %v507 = vsel %vm95, %v506, 0.0
    %508 = vadd.xlane.f32.xlu0 %v507
    %v509 = vpop.xlane.xlu0 %508
    %v510 = vmul.f32 %v503, %v38
    %v511 = vsel %vm95, %v510, 0.0
    %512 = vadd.xlane.f32.xlu0 %v511
    %v513 = vpop.xlane.xlu0 %512
    %v514 = vmul.f32 %v509, %v37
    %v515 = vmul.f32 %v513, %v38
    %v516 = vadd.f32 %v514, %v515
    %v517 = vmul.f32 %v516, 0.03125
    %v518 = vsub.f32 %v503, %v517
    %v519 = vmul.f32 %v518, %v518
    %v520 = vmul.f32 %v519, %v37
    %v521 = vsel %vm95, %v520, 0.0
    %522 = vadd.xlane.f32.xlu0 %v521
    %v523 = vpop.xlane.xlu0 %522
    %v524 = vmul.f32 %v519, %v38
    %v525 = vsel %vm95, %v524, 0.0
    %526 = vadd.xlane.f32.xlu0 %v525
    %v527 = vpop.xlane.xlu0 %526
    %v528 = vmul.f32 %v523, %v37
    %v529 = vmul.f32 %v527, %v38
    %v530 = vadd.f32 %v528, %v529
    %v531 = vmul.f32 %v530, 0.03125
    %v532 = vadd.f32 %v531, 1e-05
    %v533 = vrsqrt.pop %v532
    %v534 = vmul.f32 %v533, %v532
    %v535 = vmul.f32 %v534, %v533
    %v536 = vmul.f32 0.5, %v535
    %v537 = vsub.f32 1.5, %v536
    %v538 = vmul.f32 %v533, %v537
    %vm539 = vweird.f32 %v532
    %vm540 = vweird.f32 %v533
    %vm541 = vmor %vm539, %vm540
    %v542 = vsel %vm541, %v533, %v538
    %v543 = vmul.f32 %v518, %v542
    %v544 = vperm.slane %v504, 0
    %v545 = vmul.f32 %v543, %v544
    %v546 = vperm.slane %v505, 0
    %v547 = vadd.f32 %v545, %v546
    %v549 = vsel %vm95, %v547, 0
    %551 = vmatpush.msra.mxu0 0.0
    %552 = vmatpush.msra.mxu0 0.0
    %553 = vmatpush.msra.mxu0 0.0
    %554 = vmatpush.msra.mxu0 0.0
    %555 = vmatpush.msra.mxu0 0.0
    %556 = vmatpush.msra.mxu0 0.0
    %557 = vmatpush.msra.mxu0 0.0
    %558 = vmatpush.msra.mxu0 0.0
    %559 = vmatpush.msra.mxu0 %v477
    %560 = vmatpush.msra.mxu0 %v476
    %561 = vmatpush.msra.mxu0 %v475
    %562 = vmatpush.msra.mxu0 %v474
    %563 = vmatpush.msra.mxu0 %v473
    %564 = vmatpush.msra.mxu0 %v472
    %565 = vmatpush.msra.mxu0 %v471
    %566 = vmatpush.msra.mxu0 %v470
    %567 = vmatmul.f32.gmra.mxu0 %v549
    %v568 = vpop.f32.mrf.mxu0
    %v569 = vadd.f32 0.0, %v568
    %570 = vdwg.mxu0
    %v571 = vld [vmem:[%s3 + $0x13] sm:$0x1]
    %v572 = vperm.slane %v571, 0
    %574 = vrot.lane.b32.xlu0 %v572, 64
    %v575 = vpop.permute.xlu0 %574
    %v577 = vadd.f32 %v569, %v575
    %v578 = vmax.f32 %v577, 0.0
    %s579 = scalar_lea.vmem [#allocation2], 256
    %v580 = vld [vmem:[%s579] sm:$0xff]
    %v581 = vld [vmem:[%s579 + $0x8] sm:$0xff]
    %v582 = vld [vmem:[%s579 + $0x10] sm:$0xff]
    %v583 = vld [vmem:[%s579 + $0x18] sm:$0xff]
    %v584 = vld [vmem:[%s579 + $0x20] sm:$0xff]
    %v585 = vld [vmem:[%s579 + $0x28] sm:$0xff]
    %v586 = vld [vmem:[%s579 + $0x30] sm:$0xff]
    %v587 = vld [vmem:[%s579 + $0x38] sm:$0xff]
    %v588 = vld [vmem:[%s3 + $0x14] sm:$0x1]
    %v589 = vperm.slane %v588, 0
    %591 = vrot.lane.b32.xlu0 %v578, 64
    %v592 = vpop.permute.xlu0 %591
    %v593 = vsel %vm95, %v592, 0
    %595 = vmatpush.msra.mxu0 0.0
    %596 = vmatpush.msra.mxu0 0.0
    %597 = vmatpush.msra.mxu0 0.0
    %598 = vmatpush.msra.mxu0 0.0
    %599 = vmatpush.msra.mxu0 0.0
    %600 = vmatpush.msra.mxu0 0.0
    %601 = vmatpush.msra.mxu0 0.0
    %602 = vmatpush.msra.mxu0 0.0
    %603 = vmatpush.msra.mxu0 %v587
    %604 = vmatpush.msra.mxu0 %v586
    %605 = vmatpush.msra.mxu0 %v585
    %606 = vmatpush.msra.mxu0 %v584
    %607 = vmatpush.msra.mxu0 %v583
    %608 = vmatpush.msra.mxu0 %v582
    %609 = vmatpush.msra.mxu0 %v581
    %610 = vmatpush.msra.mxu0 %v580
    %611 = vmatmul.f32.gmra.mxu0 %v593
    %v612 = vpop.f32.mrf.mxu0
    %v613 = vadd.f32 %v589, %v612
    %614 = vdwg.mxu0
    %v615 = vadd.f32 %v547, %v613
    %v616 = vld [vmem:[%s3 + $0x15] sm:$0x1]
    %v617 = vld [vmem:[%s3 + $0x16] sm:$0x1]
    %v618 = vmul.f32 %v615, %v37
    %v619 = vsel %vm95, %v618, 0.0
    %620 = vadd.xlane.f32.xlu0 %v619
    %v621 = vpop.xlane.xlu0 %620
    %v622 = vmul.f32 %v615, %v38
    %v623 = vsel %vm95, %v622, 0.0
    %624 = vadd.xlane.f32.xlu0 %v623
    %v625 = vpop.xlane.xlu0 %624
    %v626 = vmul.f32 %v621, %v37
    %v627 = vmul.f32 %v625, %v38
    %v628 = vadd.f32 %v626, %v627
    %v629 = vmul.f32 %v628, 0.03125
    %v630 = vsub.f32 %v615, %v629
    %v631 = vmul.f32 %v630, %v630
    %v632 = vmul.f32 %v631, %v37
    %v633 = vsel %vm95, %v632, 0.0
    %634 = vadd.xlane.f32.xlu0 %v633
    %v635 = vpop.xlane.xlu0 %634
    %v636 = vmul.f32 %v631, %v38
    %v637 = vsel %vm95, %v636, 0.0
    %638 = vadd.xlane.f32.xlu0 %v637
    %v639 = vpop.xlane.xlu0 %638
    %v640 = vmul.f32 %v635, %v37
    %v641 = vmul.f32 %v639, %v38
    %v642 = vadd.f32 %v640, %v641
    %v643 = vmul.f32 %v642, 0.03125
    %v644 = vadd.f32 %v643, 1e-05
    %v645 = vrsqrt.pop %v644
    %v646 = vmul.f32 %v645, %v644
    %v647 = vmul.f32 %v646, %v645
    %v648 = vmul.f32 0.5, %v647
    %v649 = vsub.f32 1.5, %v648
    %v650 = vmul.f32 %v645, %v649
    %vm651 = vweird.f32 %v644
    %vm652 = vweird.f32 %v645
    %vm653 = vmor %vm651, %vm652
    %v654 = vsel %vm653, %v645, %v650
    %v655 = vmul.f32 %v630, %v654
    %v656 = vperm.slane %v616, 0
    %v657 = vmul.f32 %v655, %v656
    %v658 = vperm.slane %v617, 0
    %v659 = vadd.f32 %v657, %v658
    %v661 = vsel %vm95, %v659, 0
    %663 = vmatpush.msra.mxu0 0.0
    %664 = vmatpush.msra.mxu0 0.0
    %665 = vmatpush.msra.mxu0 0.0
    %666 = vmatpush.msra.mxu0 0.0
    %667 = vmatpush.msra.mxu0 0.0
    %668 = vmatpush.msra.mxu0 0.0
    %669 = vmatpush.msra.mxu0 0.0
    %670 = vmatpush.msra.mxu0 0.0
    %671 = vmatpush.msra.mxu0 %v587
    %672 = vmatpush.msra.mxu0 %v586
    %673 = vmatpush.msra.mxu0 %v585
    %674 = vmatpush.msra.mxu0 %v584
    %675 = vmatpush.msra.mxu0 %v583
    %676 = vmatpush.msra.mxu0 %v582
    %677 = vmatpush.msra.mxu0 %v581
    %678 = vmatpush.msra.mxu0 %v580
    %679 = vmatmul.f32.gmra.mxu0 %v661
    %v680 = vpop.f32.mrf.mxu0
    %v681 = vadd.f32 0.0, %v680
    %682 = vdwg.mxu0
    %v683 = vld [vmem:[%s3 + $0x7] sm:$0x1]
    %v684 = vperm.slane %v683, 0
    %686 = vrot.lane.b32.xlu0 %v684, 64
    %v687 = vpop.permute.xlu0 %686
    %v689 = vadd.f32 %v681, %v687
    %v690 = vmax.f32 %v689, 0.0
    %s691 = scalar_lea.vmem [#allocation2], 320
    %v692 = vld [vmem:[%s691] sm:$0xff]
    %v693 = vld [vmem:[%s691 + $0x8] sm:$0xff]
    %v694 = vld [vmem:[%s691 + $0x10] sm:$0xff]
    %v695 = vld [vmem:[%s691 + $0x18] sm:$0xff]
    %v696 = vld [vmem:[%s691 + $0x20] sm:$0xff]
    %v697 = vld [vmem:[%s691 + $0x28] sm:$0xff]
    %v698 = vld [vmem:[%s691 + $0x30] sm:$0xff]
    %v699 = vld [vmem:[%s691 + $0x38] sm:$0xff]
    %v700 = vld [vmem:[%s3 + $0xf] sm:$0x1]
    %v701 = vperm.slane %v700, 0
    %703 = vrot.lane.b32.xlu0 %v690, 64
    %v704 = vpop.permute.xlu0 %703
    %v705 = vsel %vm95, %v704, 0
    %707 = vmatpush.msra.mxu0 0.0
    %708 = vmatpush.msra.mxu0 0.0
    %709 = vmatpush.msra.mxu0 0.0
    %710 = vmatpush.msra.mxu0 0.0
    %711 = vmatpush.msra.mxu0 0.0
    %712 = vmatpush.msra.mxu0 0.0
    %713 = vmatpush.msra.mxu0 0.0
    %714 = vmatpush.msra.mxu0 0.0
    %715 = vmatpush.msra.mxu0 %v699
    %716 = vmatpush.msra.mxu0 %v698
    %717 = vmatpush.msra.mxu0 %v697
    %718 = vmatpush.msra.mxu0 %v696
    %719 = vmatpush.msra.mxu0 %v695
    %720 = vmatpush.msra.mxu0 %v694
    %721 = vmatpush.msra.mxu0 %v693
    %722 = vmatpush.msra.mxu0 %v692
    %723 = vmatmul.f32.gmra.mxu0 %v705
    %v724 = vpop.f32.mrf.mxu0
    %v725 = vadd.f32 %v701, %v724
    %726 = vdwg.mxu0
    %v727 = vmax.f32 %v725, 0.0
    %v729 = vsel %vm95, %v727, 0
    %731 = vmatpush.msra.mxu0 0.0
    %732 = vmatpush.msra.mxu0 0.0
    %733 = vmatpush.msra.mxu0 0.0
    %734 = vmatpush.msra.mxu0 0.0
    %735 = vmatpush.msra.mxu0 0.0
    %736 = vmatpush.msra.mxu0 0.0
    %737 = vmatpush.msra.mxu0 0.0
    %738 = vmatpush.msra.mxu0 0.0
    %739 = vmatpush.msra.mxu0 %v699
    %740 = vmatpush.msra.mxu0 %v698
    %741 = vmatpush.msra.mxu0 %v697
    %742 = vmatpush.msra.mxu0 %v696
    %743 = vmatpush.msra.mxu0 %v695
    %744 = vmatpush.msra.mxu0 %v694
    %745 = vmatpush.msra.mxu0 %v693
    %746 = vmatpush.msra.mxu0 %v692
    %747 = vmatmul.f32.gmra.mxu0 %v729
    %v748 = vpop.f32.mrf.mxu0
    %v749 = vadd.f32 0.0, %v748
    %750 = vdwg.mxu0
    %v751 = vld [vmem:[%s3 + $0x17] sm:$0x1]
    %v752 = vperm.slane %v751, 0
    %754 = vrot.lane.b32.xlu0 %v752, 64
    %v755 = vpop.permute.xlu0 %754
    %v757 = vadd.f32 %v749, %v755
    %v758 = vmax.f32 %v757, 0.0
    %v759 = vld [vmem:[%s3 + $0x18] sm:$0x1]
    %v760 = vperm.slane %v759, 0
    %762 = vrot.lane.b32.xlu0 %v760, 64
    %v763 = vpop.permute.xlu0 %762
    %v765 = vmul.f32 %v758, %v763
    %767 = vrot.lane.b32.xlu0 %v765, 64
    %v768 = vpop.permute.xlu0 %767
    %v770 = vsel %vm95, %v768, 0.0
    %771 = vadd.xlane.f32.xlu0 %v770
    %v772 = vpop.xlane.xlu0 %771
    %v773 = vld [vmem:[%s3 + $0x19] sm:$0x1]
    %v774 = vperm.slane %v773, 0
    %v775 = vadd.f32 %v772, %v774
    %vm776 = vcmask 7168
    %777 = vst.msk [vmem:[%s4] sm:$0xff] %vm776, %v775
    // Predicated region
    $region22: #{ncf_att_forward.1} parent=1 // pred_check
      _
    $region23: #{ncf_att_forward.1} parent=1 // pred_check_branch
      %779 = sbr.rel (0) target = $region25
    $region24: #{ncf_att_forward.1} parent=1 // pred_region
      _
    $region25: #{ncf_att_forward.1} parent=1 // pred_fallthru
      _
    // Predicated region
    $region26: #{ncf_att_forward.1} parent=1 // pred_check
      _
    $region27: #{ncf_att_forward.1} parent=1 // pred_check_branch
      %781 = sbr.rel (0) target = $region29
    $region28: #{ncf_att_forward.1} parent=1 // pred_region
      _
    $region29: #{ncf_att_forward.1} parent=1 // pred_fallthru
      _
    %782 = vsyncpa [#allocation3], 1

</llo_original>
